<compile_context>
chip_gen: v7x
topology: tpu7x:2x2x1
jax: 0.10.0
libtpu: 0.0.40
codegen_flags: <defaults>
</compile_context>

<pallas_src>
import jax
import jax.numpy as jnp
from jax.experimental import pallas as pl
from jax.experimental.pallas import tpu as pltpu


# ----------------------------------------------------------------------------
# Kernel: fused (per-channel normalize + 1x1-conv stem + ReLU), NCHW layout.
# ----------------------------------------------------------------------------
def _fused_stem_kernel(wt_ref, b_ref, x_ref, out_ref):
    # wt_ref: (Cout, C)   b_ref: (Cout, 1)
    # x_ref : (C, T)      out_ref: (Cout, T)     T = HW tile (lane-dense)
    y = jnp.dot(wt_ref[...], x_ref[...],
                preferred_element_type=jnp.float32,
                precision=jax.lax.Precision.HIGHEST)
    out_ref[...] = jnp.maximum(y + b_ref[...], 0.0).astype(out_ref.dtype)


def _pick_hw_tile(hw, cap=32768):
    """HW tile: as large as possible up to `cap`, 128-aligned.

    Footprint at cap=32768 (f32, Cout=32) ≈ 280*T bytes ≈ 8.75 MiB with
    double-buffering — fits v5e's 16 MiB default scoped VMEM with headroom
    (and trivially v6e/v7x).  Prefers an exact divisor of hw (no ragged
    block); otherwise returns a 128-aligned tile and relies on the cdiv grid
    to mask the ragged last block (never a full-HW single block blowup).
    """
    if hw <= cap:
        return hw                              # whole image row-major in one block
    cap128 = cap - cap % 128
    for cand in range(cap128, 127, -128):
        if hw % cand == 0:
            return cand                        # exact divisor: no ragged block
    return cap128                              # ragged last block via cdiv grid


def backbone_stem_fused(images_nchw, wt_fused, b_fused, out_dtype=jnp.float32):
    """images: (B, C, H, W) raw (un-normalized) f32; returns (B, Cout, H, W)."""
    B, C, H, W = images_nchw.shape
    Cout = wt_fused.shape[0]
    HW = H * W
    T = _pick_hw_tile(HW)
    x = images_nchw.reshape(B, C, HW)          # free view of contiguous NCHW
    y = pl.pallas_call(
        _fused_stem_kernel,
        out_shape=jax.ShapeDtypeStruct((B, Cout, HW), out_dtype),
        grid=(B, pl.cdiv(HW, T)),
        in_specs=[
            pl.BlockSpec((Cout, C), lambda b, t: (0, 0)),        # fused weights
            pl.BlockSpec((Cout, 1), lambda b, t: (0, 0)),        # fused bias
            pl.BlockSpec((None, C, T), lambda b, t: (b, 0, t)),  # image tile
        ],
        out_specs=pl.BlockSpec((None, Cout, T), lambda b, t: (b, 0, t)),
        compiler_params=pltpu.CompilerParams(
            dimension_semantics=("parallel", "parallel"),
            vmem_limit_bytes=32 * 1024 * 1024),
    )(wt_fused, b_fused, x)
    return y.reshape(B, Cout, H, W)            # already NCHW — no transpose


# ----------------------------------------------------------------------------
# Box normalization: box_convert(xyxy -> cxcywh) / [W, H, W, H].
# Plain jnp (tens of boxes x 4 floats: a Pallas launch would be pure overhead;
# XLA fuses this into the surrounding graph for free).
# ----------------------------------------------------------------------------
def norm_boxes(boxes, h, w):
    boxes = jnp.asarray(boxes, jnp.float32)
    x0, y0, x1, y1 = boxes[:, 0], boxes[:, 1], boxes[:, 2], boxes[:, 3]
    cxcywh = jnp.stack(
        [(x0 + x1) * 0.5, (y0 + y1) * 0.5, x1 - x0, y1 - y0], axis=-1)
    return cxcywh / jnp.array([w, h, w, h], jnp.float32)


# ----------------------------------------------------------------------------
# DetectionMOT wrapper (glue stays in plain JAX / Python)
# ----------------------------------------------------------------------------
class DetectionMOTPallas:
    def __init__(self, pixel_mean, pixel_std, in_channels=3, feat_channels=32,
                 feature_dtype=jnp.float32):
        self.pixel_mean = jnp.asarray(pixel_mean, jnp.float32)   # (C,)
        self.pixel_std = jnp.asarray(pixel_std, jnp.float32)     # (C,)
        assert self.pixel_mean.shape == self.pixel_std.shape, (
            f"{self.pixel_mean} and {self.pixel_std} have different shapes!")
        # Set feature_dtype=jnp.bfloat16 if the downstream track_head accepts
        # bf16 — halves the dominant HBM write stream of the stem kernel.
        self.feature_dtype = feature_dtype
        # Deterministic synthetic backbone-stem parameters (no checkpoint).
        k = in_channels * feat_channels
        self.stem_w = (jnp.arange(k, dtype=jnp.float32)
                       .reshape(in_channels, feat_channels) / float(k)) - 0.5
        self.stem_b = jnp.linspace(-0.1, 0.1, feat_channels, dtype=jnp.float32)
        # Fold (x - mean)/std into the stem (exact): W' = W/std, b' = b-(mean/std)@W.
        inv_std = 1.0 / self.pixel_std
        w_fused = self.stem_w * inv_std[:, None]                       # (C, Cout)
        b_fused = self.stem_b - (self.pixel_mean * inv_std) @ self.stem_w
        self.wt_fused = jnp.asarray(w_fused.T)                         # (Cout, C)
        self.b_fused = b_fused.reshape(feat_channels, 1)               # (Cout, 1)

    # ---- preprocess_inputs: stack + batch. Normalization is fused into the
    # stem weights (exact), so no separate HBM pass over the images. Padding
    # to /32 (ImageList.from_tensors) is a no-op for /32-sized inputs. --------
    def preprocess_inputs(self, batched_inputs):
        samples = {}
        for s in ("template", "search"):
            images = jnp.stack(
                [x[f"{s}_images"] for x in batched_inputs]).astype(jnp.float32)
            masks = jnp.stack([
                x.get(f"{s}_att",
                      jnp.zeros(x[f"{s}_images"].shape[-2:], jnp.float32))
                for x in batched_inputs])
            samples[s] = {"tensor": images, "mask": masks}
        return samples

    # ---- prepare_mot_targets (plain jnp) ------------------------------------
    def prepare_mot_targets(self, data):
        det_targets, track_targets = [], []
        for d in data:
            th, tw = d["template_images"].shape[-2:]
            sh, sw = d["search_images"].shape[-2:]
            det_targets.append({
                "boxes": norm_boxes(d["template_boxes"], th, tw),
                "labels": jnp.asarray(d["template_labels"]),
            })
            track_targets.append({
                "boxes": norm_boxes(d["search_boxes"], sh, sw),
                "labels": jnp.asarray(d["search_labels"]),
            })
        return {"det_targets": det_targets, "track_targets": track_targets}

    def forward(self, data):
        samples = self.preprocess_inputs(data)
        targets = self.prepare_mot_targets(data)
        t = samples["template"]["tensor"]
        s = samples["search"]["tensor"]
        if t.shape == s.shape:
            # One pallas_call over both streams: halves fixed launch cost and
            # doubles the parallel grid steps available to the v7x megacore.
            feats = backbone_stem_fused(jnp.concatenate([t, s], axis=0),
                                        self.wt_fused, self.b_fused,
                                        out_dtype=self.feature_dtype)
            B = t.shape[0]
            template_features, search_features = feats[:B], feats[B:]
        else:
            template_features = backbone_stem_fused(
                t, self.wt_fused, self.b_fused, out_dtype=self.feature_dtype)
            search_features = backbone_stem_fused(
                s, self.wt_fused, self.b_fused, out_dtype=self.feature_dtype)
        # TODO(synk): track_head and objective are external, config-built
        # modules (build_backbone / build_objective) not defined in this
        # module; returning backbone-stem features + prepared targets instead.
        return {
            "template_features": template_features,
            "search_features": search_features,
            "template_mask": samples["template"]["mask"],
            "search_mask": samples["search"]["mask"],
            "targets": targets,
        }


# ----------------------------------------------------------------------------
# Pure-JAX references (exact f32, no MXU) for a lightweight sanity check.
# ----------------------------------------------------------------------------
def _stem_reference(images, w, b, mean, std):
    xn = (images - mean[None, :, None, None]) / std[None, :, None, None]
    B, C, H, W = images.shape
    y = jnp.zeros((B, w.shape[1], H, W), jnp.float32)
    for c in range(C):
        y = y + xn[:, c, None, :, :] * w[c][None, :, None, None]
    return jnp.maximum(y + b[None, :, None, None], 0.0)


def _box_reference(boxes, h, w):
    x0, y0, x1, y1 = boxes[:, 0], boxes[:, 1], boxes[:, 2], boxes[:, 3]
    cxcywh = jnp.stack([(x0 + x1) * 0.5, (y0 + y1) * 0.5, x1 - x0, y1 - y0], 1)
    return cxcywh / jnp.array([w, h, w, h], jnp.float32)


# ----------------------------------------------------------------------------
# Demo
# ----------------------------------------------------------------------------
if __name__ == "__main__":
    key = jax.random.PRNGKey(0)
    B, C, H, W, NBOX = 2, 3, 32, 32, 5

    data = []
    for _ in range(B):
        key, k1, k2, k3, k4 = jax.random.split(key, 5)
        timg = jax.random.uniform(k1, (C, H, W), jnp.float32) * 255.0
        simg = jax.random.uniform(k2, (C, H, W), jnp.float32) * 255.0
        xy0 = jax.random.uniform(k3, (NBOX, 2), jnp.float32) * (W / 2)
        wh = 1.0 + jax.random.uniform(k4, (NBOX, 2), jnp.float32) * (W / 2 - 1)
        tboxes = jnp.concatenate([xy0, xy0 + wh], axis=1)
        sboxes = jnp.concatenate([xy0 * 0.9 + 1.0, xy0 * 0.9 + 1.0 + wh], axis=1)
        data.append({
            "template_images": timg,
            "search_images": simg,
            "template_boxes": tboxes,
            "search_boxes": sboxes,
            "template_labels": jnp.zeros((NBOX,), jnp.int32),
            "search_labels": jnp.zeros((NBOX,), jnp.int32),
            "template_att": jnp.zeros((H, W), jnp.float32),
            "search_att": jnp.zeros((H, W), jnp.float32),
        })

    model = DetectionMOTPallas(
        pixel_mean=(123.675, 116.28, 103.53),
        pixel_std=(58.395, 57.12, 57.375),
        in_channels=C,
        feat_channels=32,
    )

    out = model.forward(data)
    jax.block_until_ready(out["template_features"])
    jax.block_until_ready(out["search_features"])
    for t in out["targets"]["det_targets"] + out["targets"]["track_targets"]:
        jax.block_until_ready(t["boxes"])

    # Sanity checks: fused normalize+stem vs. unfused reference, boxes vs. jnp.
    timgs = jnp.stack([d["template_images"] for d in data]).astype(jnp.float32)
    ref_feat = _stem_reference(timgs, model.stem_w, model.stem_b,
                               model.pixel_mean, model.pixel_std)
    assert jnp.allclose(out["template_features"].astype(jnp.float32), ref_feat,
                        atol=1e-3, rtol=1e-3), "stem mismatch"
    simgs = jnp.stack([d["search_images"] for d in data]).astype(jnp.float32)
    ref_feat_s = _stem_reference(simgs, model.stem_w, model.stem_b,
                                 model.pixel_mean, model.pixel_std)
    assert jnp.allclose(out["search_features"].astype(jnp.float32), ref_feat_s,
                        atol=1e-3, rtol=1e-3), "stem (search) mismatch"
    ref_box = _box_reference(data[0]["template_boxes"], H, W)
    assert jnp.allclose(out["targets"]["det_targets"][0]["boxes"], ref_box,
                        atol=1e-5, rtol=1e-5), "box mismatch"

    print("KERNEL_OK")
</pallas_src>

<mosaic_0001>
module attributes {stable_mosaic.version = 11 : i64} {
  func.func @_fused_stem_kernel(%arg0: i32, %arg1: i32, %arg2: memref<32x3xf32, #tpu.memory_space<vmem>>, %arg3: memref<32x1xf32, #tpu.memory_space<vmem>>, %arg4: memref<1x3x1024xf32, #tpu.memory_space<vmem>>, %arg5: memref<1x32x1024xf32, #tpu.memory_space<vmem>>) attributes {dimension_semantics = [#tpu.dimension_semantics<parallel>, #tpu.dimension_semantics<parallel>], iteration_bounds = array<i64: 4, 1>, scalar_prefetch = 0 : i64, scratch_operands = 0 : i64, tpu.core_type = #tpu.core_type<tc>, window_params = [{pipeline_mode = #tpu.pipeline_mode<synchronous>, transform_indices = @transform_0, window_bounds = array<i64: 32, 3>}, {pipeline_mode = #tpu.pipeline_mode<synchronous>, transform_indices = @transform_1, window_bounds = array<i64: 32, 1>}, {transform_indices = @transform_2, window_bounds = array<i64: 1, 3, 1024>}, {transform_indices = @transform_3, window_bounds = array<i64: 1, 32, 1024>}]} {
    %c0 = arith.constant 0 : index
    %c0_0 = arith.constant 0 : index
    %0 = vector.load %arg2[%c0, %c0_0] : memref<32x3xf32, #tpu.memory_space<vmem>>, vector<32x3xf32>
    %c0_1 = arith.constant 0 : index
    %c0_2 = arith.constant 0 : index
    %c0_3 = arith.constant 0 : index
    %1 = vector.load %arg4[%c0_1, %c0_2, %c0_3] : memref<1x3x1024xf32, #tpu.memory_space<vmem>>, vector<1x3x1024xf32>
    %2 = vector.shape_cast %1 : vector<1x3x1024xf32> to vector<3x1024xf32>
    %cst = arith.constant dense<0.000000e+00> : vector<32x1024xf32>
    %3 = tpu.matmul %0, %2, %cst {dimension_numbers = #tpu.dot_dimension_numbers<[1], [0], [0], [1], [0, 0, 1, 1], [], []>, precision = #tpu.contract_precision<fp32>} : vector<32x3xf32>, vector<3x1024xf32>, vector<32x1024xf32> -> vector<32x1024xf32>
    %c0_4 = arith.constant 0 : index
    %c0_5 = arith.constant 0 : index
    %4 = vector.load %arg3[%c0_4, %c0_5] : memref<32x1xf32, #tpu.memory_space<vmem>>, vector<32x1xf32>
    %5 = vector.broadcast %4 : vector<32x1xf32> to vector<32x1024xf32>
    %6 = arith.addf %3, %5 : vector<32x1024xf32>
    %cst_6 = arith.constant 0.000000e+00 : f32
    %7 = vector.broadcast %cst_6 : f32 to vector<32x1024xf32>
    %8 = arith.maximumf %6, %7 : vector<32x1024xf32>
    %c0_7 = arith.constant 0 : index
    %c0_8 = arith.constant 0 : index
    %c0_9 = arith.constant 0 : index
    %9 = vector.load %arg5[%c0_7, %c0_8, %c0_9] : memref<1x32x1024xf32, #tpu.memory_space<vmem>>, vector<1x32x1024xf32>
    %10 = vector.shape_cast %9 : vector<1x32x1024xf32> to vector<32x1024xf32>
    %11 = vector.shape_cast %8 : vector<32x1024xf32> to vector<1x32x1024xf32>
    tpu.vector_store %arg5[%c0_7, %c0_8, %c0_9], %11 {strides = array<i32>} : memref<1x32x1024xf32, #tpu.memory_space<vmem>>, vector<1x32x1024xf32>,
    return
  }
  func.func @transform_0(%arg0: i32, %arg1: i32) -> (i32, i32) {
    %c0_i32 = arith.constant 0 : i32
    %c0_i32_0 = arith.constant 0 : i32
    %c0_i32_1 = arith.constant 0 : i32
    return %c0_i32, %c0_i32_0 : i32, i32
  }
  func.func @transform_1(%arg0: i32, %arg1: i32) -> (i32, i32) {
    %c0_i32 = arith.constant 0 : i32
    %c0_i32_0 = arith.constant 0 : i32
    %c0_i32_1 = arith.constant 0 : i32
    return %c0_i32, %c0_i32_0 : i32, i32
  }
  func.func @transform_2(%arg0: i32, %arg1: i32) -> (i32, i32, i32) {
    %c0_i32 = arith.constant 0 : i32
    %c0_i32_0 = arith.constant 0 : i32
    return %arg0, %c0_i32, %arg1 : i32, i32, i32
  }
  func.func @transform_3(%arg0: i32, %arg1: i32) -> (i32, i32, i32) {
    %c0_i32 = arith.constant 0 : i32
    %c0_i32_0 = arith.constant 0 : i32
    return %arg0, %c0_i32, %arg1 : i32, i32, i32
  }
}

</mosaic_0001>

<llo_original>
// kernel: tpu_custom_call.1
$region0: #{tpu_custom_call.1}
  #allocation0 [shape = 'u32[]', space=smem, size = 0x4, offset = 0x4, fixed_abs, tag = 'smem constant byte address 0x4 - core index']
  #allocation1 [shape = 'u32[144,128]{1,0:T(1,128)}', space=vmem, size = 0x12000, scoped, tag = 'internal scratch']
  %s0 = inlined_call_operand.vmem [shape: f32[32,3], index: 0, kind: input, shape index: {}]
  %s1 = inlined_call_operand.vmem [shape: f32[32,1], index: 1, kind: input, shape index: {}]
  %s2 = inlined_call_operand.vmem [shape: f32[4,3,1024], index: 2, kind: input, shape index: {}]
  %s3 = inlined_call_operand.hbm [shape: f32[4,32,1024], index: 3, kind: output, shape index: {}]
  %s4 = sld [smem:[#allocation0]]
  $region45: #{tpu_custom_call.1} parent=0
    _
  %s6 = ssub.s32 1, %s4
  %s7 = scalar_select 0, %s6, %s4
  $region1: #{tpu_custom_call.1} parent=0
    #allocation2 [shape = 'u8[262144]{0}', space=vmem, size = 0x40000, scoped, tag = 'output window, operand 0']
    #allocation3 [shape = 's32[2]{0}', space=sflag, size = 0x8, scoped, tag = 'scoped memory for tpu_custom_call.1']
    %8 = vsyncpa [#allocation3], 0
    %s9 = scalar_lea.sflag [#allocation3], 1
    %10 = vsyncpa %s9, 0
    loop: start=0, step=1, limit=6
    $region2: #{tpu_custom_call.1} parent=1 // loop_pre_header
      _
    $region3: #{tpu_custom_call.1} parent=1 // loop_header
      %s12 = sphi 0, %s16
      %p13 = scmp.ge.s32.totalorder %s12, 6
      %s19 = sphi 0, %s31
      %s20 = sphi 0, %s27
      %s21 = sphi 0, %s19
      %s22 = sphi 0, %s20
      %s23 = sphi 0, %s21
      %s24 = sphi 0, %s22
      %s32 = sphi 0, %s32
      %s34 = sphi 0, %s32
      %s35 = sphi 0, %s34
      %s49 = sphi 0, %s35
      %s53 = sphi 0, %s53
      %s55 = sphi 0, %s53
      %s56 = sphi 0, %s55
      %s70 = sphi 0, %s56
      %s78 = sphi 0, %s80
      %s81 = sphi 0, %s78
      %s82 = sphi 0, %s81
      %s98 = sphi 0, %s82
      %s106 = sphi 0, %s108
      %s109 = sphi 0, %s106
      %s110 = sphi 0, %s109
      %s126 = sphi 0, %s110
    $region4: #{tpu_custom_call.1} parent=1 // loop_header_branch
      %15 = sbr.rel (%p13) target = $region8
    $region5: #{tpu_custom_call.1} parent=1 // loop_body
      %s17 = ssub.s32 %s12, 1
      %s18 = ssub.s32 %s12, 2
      %s25 = sadd.s32 1, %s20
      %p26 = scmp.ge.s32.totalorder %s25, 1
      %s27 = scalar_select %p26, 0, %s25
      %s28 = sadd.s32 1, %s19
      %s29 = scalar_select %p26, %s28, %s19
      %p30 = scmp.ge.s32.totalorder %s29, 4
      %s31 = scalar_select %p30, 0, %s29
      %s33 = sadd.s32 %s32, 1
      %p36 = scmp.eq.s32.totalorder %s12, 3
      %p37 = scmp.ne.s32.totalorder %s32, %s34
      %p38 = scmp.eq.s32.totalorder %s12, 0
      %p39 = por %p37, %p38
      %p40 = scmp.ne.s32.totalorder %s32, %s34
      %p41 = scmp.eq.s32.totalorder %s17, 3
      %p42 = por %p40, %p41
      %p43 = scmp.ne.s32.totalorder %s34, %s35
      %p44 = scmp.eq.s32.totalorder %s17, 0
      %p45 = por %p43, %p44
      %p46 = scmp.ne.s32.totalorder %s34, %s35
      %p47 = scmp.eq.s32.totalorder %s18, 3
      %p48 = por %p46, %p47
      %p50 = scmp.ne.s32.totalorder %s35, %s49
      %p51 = scmp.eq.s32.totalorder %s18, 0
      %p52 = por %p50, %p51
      %s54 = sadd.s32 %s53, 1
      %p57 = scmp.eq.s32.totalorder %s12, 3
      %p58 = scmp.ne.s32.totalorder %s53, %s55
      %p59 = scmp.eq.s32.totalorder %s12, 0
      %p60 = por %p58, %p59
      %p61 = scmp.ne.s32.totalorder %s53, %s55
      %p62 = scmp.eq.s32.totalorder %s17, 3
      %p63 = por %p61, %p62
      %p64 = scmp.ne.s32.totalorder %s55, %s56
      %p65 = scmp.eq.s32.totalorder %s17, 0
      %p66 = por %p64, %p65
      %p67 = scmp.ne.s32.totalorder %s55, %s56
      %p68 = scmp.eq.s32.totalorder %s18, 3
      %p69 = por %p67, %p68
      %p71 = scmp.ne.s32.totalorder %s56, %s70
      %p72 = scmp.eq.s32.totalorder %s18, 0
      %p73 = por %p71, %p72
      %s74 = ssub.s32 %s19, %s31
      %s75 = ssub.s32 %s20, %s27
      %s76 = sor.u32 %s74, %s75
      %p77 = scmp.eq.s32.totalorder %s76, 0
      %s79 = sadd.s32 %s78, 1
      %s80 = scalar_select %p77, %s78, %s79
      %p83 = pneg %p77
      %p84 = scmp.eq.s32.totalorder %s12, 3
      %p85 = por %p83, %p84
      %p86 = scmp.ne.s32.totalorder %s78, %s81
      %p87 = scmp.eq.s32.totalorder %s12, 0
      %p88 = por %p86, %p87
      %p89 = scmp.ne.s32.totalorder %s78, %s81
      %p90 = scmp.eq.s32.totalorder %s17, 3
      %p91 = por %p89, %p90
      %p92 = scmp.ne.s32.totalorder %s81, %s82
      %p93 = scmp.eq.s32.totalorder %s17, 0
      %p94 = por %p92, %p93
      %p95 = scmp.ne.s32.totalorder %s81, %s82
      %p96 = scmp.eq.s32.totalorder %s18, 3
      %p97 = por %p95, %p96
      %p99 = scmp.ne.s32.totalorder %s82, %s98
      %p100 = scmp.eq.s32.totalorder %s18, 0
      %p101 = por %p99, %p100
      %s102 = ssub.s32 %s19, %s31
      %s103 = ssub.s32 %s20, %s27
      %s104 = sor.u32 %s102, %s103
      %p105 = scmp.eq.s32.totalorder %s104, 0
      %s107 = sadd.s32 %s106, 1
      %s108 = scalar_select %p105, %s106, %s107
      %p111 = pneg %p105
      %p112 = scmp.eq.s32.totalorder %s12, 3
      %p113 = por %p111, %p112
      %p114 = scmp.ne.s32.totalorder %s106, %s109
      %p115 = scmp.eq.s32.totalorder %s12, 0
      %p116 = por %p114, %p115
      %p117 = scmp.ne.s32.totalorder %s106, %s109
      %p118 = scmp.eq.s32.totalorder %s17, 3
      %p119 = por %p117, %p118
      %p120 = scmp.ne.s32.totalorder %s109, %s110
      %p121 = scmp.eq.s32.totalorder %s17, 0
      %p122 = por %p120, %p121
      %p123 = scmp.ne.s32.totalorder %s109, %s110
      %p124 = scmp.eq.s32.totalorder %s18, 3
      %p125 = por %p123, %p124
      %p127 = scmp.ne.s32.totalorder %s110, %s126
      %p128 = scmp.eq.s32.totalorder %s18, 0
      %p129 = por %p127, %p128
      %p130 = scmp.le.s32.totalorder 1, %s12
      %p131 = scmp.lt.s32.totalorder %s12, 5
      %p132 = pnand %p130, %p131
      %p133 = pneg %p132
      // Predicated region
      $region9: #{tpu_custom_call.1} parent=5 // pred_check
        _
      $region10: #{tpu_custom_call.1} parent=5 // pred_check_branch
        %135 = sbr.rel (%p132) target = $region12
      $region11: #{tpu_custom_call.1} parent=5 // pred_region
        %s136 = ssub.s32 %s12, 1
        // Predicated region
        $region13: #{tpu_custom_call.1} parent=11 // pred_check
          %p137 = pneg %p45
        $region14: #{tpu_custom_call.1} parent=11 // pred_check_branch
          %139 = sbr.rel (%p137) target = $region16
        $region15: #{tpu_custom_call.1} parent=11 // pred_region
          _
        $region16: #{tpu_custom_call.1} parent=11 // pred_fallthru
          _
        // Predicated region
        $region17: #{tpu_custom_call.1} parent=11 // pred_check
          %p140 = pneg %p66
        $region18: #{tpu_custom_call.1} parent=11 // pred_check_branch
          %142 = sbr.rel (%p140) target = $region20
        $region19: #{tpu_custom_call.1} parent=11 // pred_region
          _
        $region20: #{tpu_custom_call.1} parent=11 // pred_fallthru
          _
      $region12: #{tpu_custom_call.1} parent=5 // pred_fallthru
        _
      %p143 = scmp.lt.s32.totalorder %s12, 4
      // Predicated region
      $region21: #{tpu_custom_call.1} parent=5 // pred_check
        %p144 = pneg %p143
      $region22: #{tpu_custom_call.1} parent=5 // pred_check_branch
        %146 = sbr.rel (%p144) target = $region24
      $region23: #{tpu_custom_call.1} parent=5 // pred_region
        // Predicated region
        $region25: #{tpu_custom_call.1} parent=23 // pred_check
          %p147 = pneg %p88
        $region26: #{tpu_custom_call.1} parent=23 // pred_check_branch
          %149 = sbr.rel (%p147) target = $region28
        $region27: #{tpu_custom_call.1} parent=23 // pred_region
          %s150 = smul.u32 8, %s20
          %p151 = scmp.lt.s32.totalorder %s19, 3
          %s152 = scalar_select %p151, %s19, 3
          %p153 = scmp.lt.s32.totalorder %s150, 7
          %s154 = scalar_select %p153, %s150, 7
          %s155 = smul.addr %s152, 8
          %s156 = sadd.s32 %s154, %s155
          %s157 = smul.addr %s156, 4
          %s158 = scalar_lea.vmem %s2, %s157
          %s159 = smul.u32 8, %s20
        $region28: #{tpu_custom_call.1} parent=23 // pred_fallthru
          _
      $region24: #{tpu_custom_call.1} parent=5 // pred_fallthru
        _
      %p160 = scmp.le.s32.totalorder 1, %s12
      %p161 = scmp.lt.s32.totalorder %s12, 5
      %p162 = pnand %p160, %p161
      %p163 = pneg %p162
      // Predicated region
      $region29: #{tpu_custom_call.1} parent=5 // pred_check
        _
      $region30: #{tpu_custom_call.1} parent=5 // pred_check_branch
        %165 = sbr.rel (%p162) target = $region32
      $region31: #{tpu_custom_call.1} parent=5 // pred_region
        %s166 = ssub.s32 %s12, 1
        %p167 = pneg %p45
        %p168 = pneg %p42
        %p169 = pneg %p66
        %p170 = pneg %p63
        %s171 = smul.u32 8, %s22
        %p172 = scmp.lt.s32.totalorder %s21, 3
        %s173 = scalar_select %p172, %s21, 3
        %p174 = scmp.lt.s32.totalorder %s171, 7
        %s175 = scalar_select %p174, %s171, 7
        %s176 = smul.addr %s173, 8
        %s177 = sadd.s32 %s175, %s176
        %s178 = smul.addr %s177, 4
        %s179 = scalar_lea.vmem %s2, %s178
        %p180 = pneg %p94
        %p181 = pneg %p91
        %p182 = pneg %p122
        %p183 = pneg %p119
        %s184 = sand.u32 %s109, 1
        %s185 = scalar_lea.sflag [#allocation3], %s184
        %s186 = sand.u32 %s109, 1
        %s187 = smul.addr %s186, 256
        %s188 = scalar_lea.vmem [#allocation2], %s187
        %s189 = smul.u32 8, %s22
        %p190 = scmp.lt.s32.totalorder %s21, 3
        %s191 = scalar_select %p190, %s21, 3
        %p192 = scmp.lt.s32.totalorder %s189, 7
        %s193 = scalar_select %p192, %s189, 7
        %s194 = smul.addr %s191, 8
        %s195 = sadd.s32 %s193, %s194
        %s196 = smul.addr %s195, 4
        %s197 = scalar_lea.vmem %s2, %s196
        %s198 = smul.u32 8, %s22
        %s199 = smul.u32 8, %s22
        %v200 = vld [vmem:[%s0] sm:$0xff]
        %v201 = vld [vmem:[%s0 + $0x8] sm:$0xff]
        %v202 = vld [vmem:[%s0 + $0x10] sm:$0xff]
        %v203 = vld [vmem:[%s0 + $0x18] sm:$0xff]
        %v204 = vld [vmem:[%s197] sm:$0x77]
        %v205 = vld [vmem:[%s197 + $0x8] sm:$0x77]
        %v206 = vld [vmem:[%s197 + $0x10] sm:$0x77]
        %v207 = vld [vmem:[%s197 + $0x18] sm:$0x77]
        %v208 = vld [vmem:[%s1] sm:$0xff]
        %v209 = vld [vmem:[%s1 + $0x8] sm:$0xff]
        %v210 = vld [vmem:[%s1 + $0x10] sm:$0xff]
        %v211 = vld [vmem:[%s1 + $0x18] sm:$0xff]
        %213 = vset.pattern.permute.xlu0 0
        %214 = vperm.xlu0 %213, %v208
        %v215 = vpop.permute.xlu0 %214
        %218 = vset.pattern.permute.xlu0 0
        %219 = vperm.xlu0 %218, %v209
        %v220 = vpop.permute.xlu0 %219
        %223 = vset.pattern.permute.xlu0 0
        %224 = vperm.xlu0 %223, %v210
        %v225 = vpop.permute.xlu0 %224
        %228 = vset.pattern.permute.xlu0 0
        %229 = vperm.xlu0 %228, %v211
        %v230 = vpop.permute.xlu0 %229
        %v236 = vcombine.high %v204, %v204
        %v237 = vcombine.high %v205, %v205
        %v238 = vcombine.high %v206, %v206
        %v239 = vcombine.high %v207, %v207
        %vm240 = vcmask 23552
        %v242 = vsel %vm240, %v200, 0
        %v245 = vsel %vm240, %v201, 0
        %v248 = vsel %vm240, %v202, 0
        %v251 = vsel %vm240, %v203, 0
        %vm253 = vcmask 1042432
        %v254 = vsel %vm253, %v204, 0
        %v256 = vsel %vm253, %v236, 0
        %v258 = vsel %vm253, %v205, 0
        %v260 = vsel %vm253, %v237, 0
        %v262 = vsel %vm253, %v206, 0
        %v264 = vsel %vm253, %v238, 0
        %v266 = vsel %vm253, %v207, 0
        %v268 = vsel %vm253, %v239, 0
        %v270 = vand.u32 %v256, 4294901760
        %271 = vmatprep.subr.mxu0 %v270
        %v272 = vand.u32 %v254, 4294901760
        %273 = vmatpush1.msra.mxu0 %v272
        %274 = vmatprep.subr.mxu0 0.0
        %275 = vmatpush1.msra.mxu0 0.0
        %276 = vmatprep.subr.mxu0 0.0
        %277 = vmatpush1.msra.mxu0 0.0
        %278 = vmatprep.subr.mxu0 0.0
        %279 = vmatpush1.msra.mxu0 0.0
        %280 = vmatprep.subr.mxu0 0.0
        %281 = vmatpush1.msra.mxu0 0.0
        %282 = vmatprep.subr.mxu0 0.0
        %283 = vmatpush1.msra.mxu0 0.0
        %284 = vmatprep.subr.mxu0 0.0
        %285 = vmatpush1.msra.mxu0 0.0
        %286 = vmatprep.subr.mxu0 0.0
        %287 = vmatpush1.msra.mxu0 0.0
        %288 = vmatprep.subr.mxu0 0.0
        %289 = vmatpush1.msra.mxu0 0.0
        %290 = vmatprep.subr.mxu0 0.0
        %291 = vmatpush1.msra.mxu0 0.0
        %292 = vmatprep.subr.mxu0 0.0
        %293 = vmatpush1.msra.mxu0 0.0
        %294 = vmatprep.subr.mxu0 0.0
        %295 = vmatpush1.msra.mxu0 0.0
        %296 = vmatprep.subr.mxu0 0.0
        %297 = vmatpush1.msra.mxu0 0.0
        %298 = vmatprep.subr.mxu0 0.0
        %299 = vmatpush1.msra.mxu0 0.0
        %300 = vmatprep.subr.mxu0 0.0
        %301 = vmatpush1.msra.mxu0 0.0
        %302 = vmatprep.subr.mxu0 0.0
        %303 = vmatpush1.msra.mxu0 0.0
        %304 = vmatprep.subr.mxu0 0.0
        %305 = vmatpush1.msra.mxu0 0.0
        %306 = vmatprep.subr.mxu0 0.0
        %307 = vmatpush1.msra.mxu0 0.0
        %308 = vmatprep.subr.mxu0 0.0
        %309 = vmatpush1.msra.mxu0 0.0
        %310 = vmatprep.subr.mxu0 0.0
        %311 = vmatpush1.msra.mxu0 0.0
        %312 = vmatprep.subr.mxu0 0.0
        %313 = vmatpush1.msra.mxu0 0.0
        %314 = vmatprep.subr.mxu0 0.0
        %315 = vmatpush1.msra.mxu0 0.0
        %316 = vmatprep.subr.mxu0 0.0
        %317 = vmatpush1.msra.mxu0 0.0
        %318 = vmatprep.subr.mxu0 0.0
        %319 = vmatpush1.msra.mxu0 0.0
        %320 = vmatprep.subr.mxu0 0.0
        %321 = vmatpush1.msra.mxu0 0.0
        %322 = vmatprep.subr.mxu0 0.0
        %323 = vmatpush1.msra.mxu0 0.0
        %324 = vmatprep.subr.mxu0 0.0
        %325 = vmatpush1.msra.mxu0 0.0
        %326 = vmatprep.subr.mxu0 0.0
        %327 = vmatpush1.msra.mxu0 0.0
        %328 = vmatprep.subr.mxu0 0.0
        %329 = vmatpush1.msra.mxu0 0.0
        %330 = vmatprep.subr.mxu0 0.0
        %331 = vmatpush1.msra.mxu0 0.0
        %332 = vmatprep.subr.mxu0 0.0
        %333 = vmatpush1.msra.mxu0 0.0
        %334 = vmatprep.subr.mxu0 0.0
        %335 = vmatpush1.msra.mxu0 0.0
        %336 = vmatprep.mubr.f32.mxu0 0.0
        %v337 = vand.u32 %v242, 4294901760
        %v338 = vsub.f32 %v242, %v337
        %v339 = vand.u32 %v338, 4294901760
        %v340 = vsub.f32 %v338, %v339
        %v341 = vand.u32 %v340, 4294901760
        %342 = vmatmul.mubr.f32.gmra.mrb[0].mxu0 %v341
        %v343 = vpop.f32.mrb[0].mxu0
        %v344 = vadd.f32 %v215, %v343
        %v345 = vpop.f32.mrb[0].mxu0
        %v346 = vadd.f32 %v215, %v345
        %347 = vmatprep.mubr.f32.mxu0 0.0
        %v348 = vand.u32 %v245, 4294901760
        %v349 = vsub.f32 %v245, %v348
        %v350 = vand.u32 %v349, 4294901760
        %v351 = vsub.f32 %v349, %v350
        %v352 = vand.u32 %v351, 4294901760
        %353 = vmatmul.mubr.f32.gmra.mrb[0].mxu0 %v352
        %v354 = vpop.f32.mrb[0].mxu0
        %v355 = vadd.f32 %v220, %v354
        %v356 = vpop.f32.mrb[0].mxu0
        %v357 = vadd.f32 %v220, %v356
        %358 = vmatprep.mubr.f32.mxu0 0.0
        %v359 = vand.u32 %v248, 4294901760
        %v360 = vsub.f32 %v248, %v359
        %v361 = vand.u32 %v360, 4294901760
        %v362 = vsub.f32 %v360, %v361
        %v363 = vand.u32 %v362, 4294901760
        %364 = vmatmul.mubr.f32.gmra.mrb[0].mxu0 %v363
        %v365 = vpop.f32.mrb[0].mxu0
        %v366 = vadd.f32 %v225, %v365
        %v367 = vpop.f32.mrb[0].mxu0
        %v368 = vadd.f32 %v225, %v367
        %369 = vmatprep.mubr.f32.mxu0 0.0
        %v370 = vand.u32 %v251, 4294901760
        %v371 = vsub.f32 %v251, %v370
        %v372 = vand.u32 %v371, 4294901760
        %v373 = vsub.f32 %v371, %v372
        %v374 = vand.u32 %v373, 4294901760
        %375 = vmatmul.mubr.f32.gmra.mrb[0].mxu0 %v374
        %v376 = vpop.f32.mrb[0].mxu0
        %v377 = vadd.f32 %v230, %v376
        %v378 = vpop.f32.mrb[0].mxu0
        %v379 = vadd.f32 %v230, %v378
        %380 = vdwg.mxu0
        %v381 = vand.u32 %v256, 4294901760
        %v382 = vsub.f32 %v256, %v381
        %v383 = vand.u32 %v382, 4294901760
        %v384 = vsub.f32 %v382, %v383
        %v385 = vand.u32 %v384, 4294901760
        %386 = vmatprep.subr.mxu0 %v385
        %v387 = vand.u32 %v254, 4294901760
        %v388 = vsub.f32 %v254, %v387
        %v389 = vand.u32 %v388, 4294901760
        %v390 = vsub.f32 %v388, %v389
        %v391 = vand.u32 %v390, 4294901760
        %392 = vmatpush1.msra.mxu0 %v391
        %393 = vmatprep.subr.mxu0 0.0
        %394 = vmatpush1.msra.mxu0 0.0
        %395 = vmatprep.subr.mxu0 0.0
        %396 = vmatpush1.msra.mxu0 0.0
        %397 = vmatprep.subr.mxu0 0.0
        %398 = vmatpush1.msra.mxu0 0.0
        %399 = vmatprep.subr.mxu0 0.0
        %400 = vmatpush1.msra.mxu0 0.0
        %401 = vmatprep.subr.mxu0 0.0
        %402 = vmatpush1.msra.mxu0 0.0
        %403 = vmatprep.subr.mxu0 0.0
        %404 = vmatpush1.msra.mxu0 0.0
        %405 = vmatprep.subr.mxu0 0.0
        %406 = vmatpush1.msra.mxu0 0.0
        %407 = vmatprep.subr.mxu0 0.0
        %408 = vmatpush1.msra.mxu0 0.0
        %409 = vmatprep.subr.mxu0 0.0
        %410 = vmatpush1.msra.mxu0 0.0
        %411 = vmatprep.subr.mxu0 0.0
        %412 = vmatpush1.msra.mxu0 0.0
        %413 = vmatprep.subr.mxu0 0.0
        %414 = vmatpush1.msra.mxu0 0.0
        %415 = vmatprep.subr.mxu0 0.0
        %416 = vmatpush1.msra.mxu0 0.0
        %417 = vmatprep.subr.mxu0 0.0
        %418 = vmatpush1.msra.mxu0 0.0
        %419 = vmatprep.subr.mxu0 0.0
        %420 = vmatpush1.msra.mxu0 0.0
        %421 = vmatprep.subr.mxu0 0.0
        %422 = vmatpush1.msra.mxu0 0.0
        %423 = vmatprep.subr.mxu0 0.0
        %424 = vmatpush1.msra.mxu0 0.0
        %425 = vmatprep.subr.mxu0 0.0
        %426 = vmatpush1.msra.mxu0 0.0
        %427 = vmatprep.subr.mxu0 0.0
        %428 = vmatpush1.msra.mxu0 0.0
        %429 = vmatprep.subr.mxu0 0.0
        %430 = vmatpush1.msra.mxu0 0.0
        %431 = vmatprep.subr.mxu0 0.0
        %432 = vmatpush1.msra.mxu0 0.0
        %433 = vmatprep.subr.mxu0 0.0
        %434 = vmatpush1.msra.mxu0 0.0
        %435 = vmatprep.subr.mxu0 0.0
        %436 = vmatpush1.msra.mxu0 0.0
        %437 = vmatprep.subr.mxu0 0.0
        %438 = vmatpush1.msra.mxu0 0.0
        %439 = vmatprep.subr.mxu0 0.0
        %440 = vmatpush1.msra.mxu0 0.0
        %441 = vmatprep.subr.mxu0 0.0
        %442 = vmatpush1.msra.mxu0 0.0
        %443 = vmatprep.subr.mxu0 0.0
        %444 = vmatpush1.msra.mxu0 0.0
        %445 = vmatprep.subr.mxu0 0.0
        %446 = vmatpush1.msra.mxu0 0.0
        %447 = vmatprep.subr.mxu0 0.0
        %448 = vmatpush1.msra.mxu0 0.0
        %449 = vmatprep.subr.mxu0 0.0
        %450 = vmatpush1.msra.mxu0 0.0
        %451 = vmatprep.subr.mxu0 0.0
        %452 = vmatpush1.msra.mxu0 0.0
        %453 = vmatprep.subr.mxu0 0.0
        %454 = vmatpush1.msra.mxu0 0.0
        %455 = vmatprep.mubr.f32.mxu0 0.0
        %v456 = vand.u32 %v242, 4294901760
        %457 = vmatmul.mubr.f32.gmra.mrb[0].mxu0 %v456
        %v458 = vpop.f32.mrb[0].mxu0
        %v459 = vadd.f32 %v344, %v458
        %v460 = vpop.f32.mrb[0].mxu0
        %v461 = vadd.f32 %v346, %v460
        %462 = vmatprep.mubr.f32.mxu0 0.0
        %v463 = vand.u32 %v245, 4294901760
        %464 = vmatmul.mubr.f32.gmra.mrb[0].mxu0 %v463
        %v465 = vpop.f32.mrb[0].mxu0
        %v466 = vadd.f32 %v355, %v465
        %v467 = vpop.f32.mrb[0].mxu0
        %v468 = vadd.f32 %v357, %v467
        %469 = vmatprep.mubr.f32.mxu0 0.0
        %v470 = vand.u32 %v248, 4294901760
        %471 = vmatmul.mubr.f32.gmra.mrb[0].mxu0 %v470
        %v472 = vpop.f32.mrb[0].mxu0
        %v473 = vadd.f32 %v366, %v472
        %v474 = vpop.f32.mrb[0].mxu0
        %v475 = vadd.f32 %v368, %v474
        %476 = vmatprep.mubr.f32.mxu0 0.0
        %v477 = vand.u32 %v251, 4294901760
        %478 = vmatmul.mubr.f32.gmra.mrb[0].mxu0 %v477
        %v479 = vpop.f32.mrb[0].mxu0
        %v480 = vadd.f32 %v377, %v479
        %v481 = vpop.f32.mrb[0].mxu0
        %v482 = vadd.f32 %v379, %v481
        %483 = vdwg.mxu0
        %v484 = vand.u32 %v256, 4294901760
        %v485 = vsub.f32 %v256, %v484
        %486 = vmatprep.subr.mxu0 %v485
        %v487 = vand.u32 %v254, 4294901760
        %v488 = vsub.f32 %v254, %v487
        %489 = vmatpush1.msra.mxu0 %v488
        %490 = vmatprep.subr.mxu0 0.0
        %491 = vmatpush1.msra.mxu0 0.0
        %492 = vmatprep.subr.mxu0 0.0
        %493 = vmatpush1.msra.mxu0 0.0
        %494 = vmatprep.subr.mxu0 0.0
        %495 = vmatpush1.msra.mxu0 0.0
        %496 = vmatprep.subr.mxu0 0.0
        %497 = vmatpush1.msra.mxu0 0.0
        %498 = vmatprep.subr.mxu0 0.0
        %499 = vmatpush1.msra.mxu0 0.0
        %500 = vmatprep.subr.mxu0 0.0
        %501 = vmatpush1.msra.mxu0 0.0
        %502 = vmatprep.subr.mxu0 0.0
        %503 = vmatpush1.msra.mxu0 0.0
        %504 = vmatprep.subr.mxu0 0.0
        %505 = vmatpush1.msra.mxu0 0.0
        %506 = vmatprep.subr.mxu0 0.0
        %507 = vmatpush1.msra.mxu0 0.0
        %508 = vmatprep.subr.mxu0 0.0
        %509 = vmatpush1.msra.mxu0 0.0
        %510 = vmatprep.subr.mxu0 0.0
        %511 = vmatpush1.msra.mxu0 0.0
        %512 = vmatprep.subr.mxu0 0.0
        %513 = vmatpush1.msra.mxu0 0.0
        %514 = vmatprep.subr.mxu0 0.0
        %515 = vmatpush1.msra.mxu0 0.0
        %516 = vmatprep.subr.mxu0 0.0
        %517 = vmatpush1.msra.mxu0 0.0
        %518 = vmatprep.subr.mxu0 0.0
        %519 = vmatpush1.msra.mxu0 0.0
        %520 = vmatprep.subr.mxu0 0.0
        %521 = vmatpush1.msra.mxu0 0.0
        %522 = vmatprep.subr.mxu0 0.0
        %523 = vmatpush1.msra.mxu0 0.0
        %524 = vmatprep.subr.mxu0 0.0
        %525 = vmatpush1.msra.mxu0 0.0
        %526 = vmatprep.subr.mxu0 0.0
        %527 = vmatpush1.msra.mxu0 0.0
        %528 = vmatprep.subr.mxu0 0.0
        %529 = vmatpush1.msra.mxu0 0.0
        %530 = vmatprep.subr.mxu0 0.0
        %531 = vmatpush1.msra.mxu0 0.0
        %532 = vmatprep.subr.mxu0 0.0
        %533 = vmatpush1.msra.mxu0 0.0
        %534 = vmatprep.subr.mxu0 0.0
        %535 = vmatpush1.msra.mxu0 0.0
        %536 = vmatprep.subr.mxu0 0.0
        %537 = vmatpush1.msra.mxu0 0.0
        %538 = vmatprep.subr.mxu0 0.0
        %539 = vmatpush1.msra.mxu0 0.0
        %540 = vmatprep.subr.mxu0 0.0
        %541 = vmatpush1.msra.mxu0 0.0
        %542 = vmatprep.subr.mxu0 0.0
        %543 = vmatpush1.msra.mxu0 0.0
        %544 = vmatprep.subr.mxu0 0.0
        %545 = vmatpush1.msra.mxu0 0.0
        %546 = vmatprep.subr.mxu0 0.0
        %547 = vmatpush1.msra.mxu0 0.0
        %548 = vmatprep.subr.mxu0 0.0
        %549 = vmatpush1.msra.mxu0 0.0
        %550 = vmatprep.subr.mxu0 0.0
        %551 = vmatpush1.msra.mxu0 0.0
        %552 = vmatprep.mubr.f32.mxu0 0.0
        %v553 = vand.u32 %v242, 4294901760
        %v554 = vsub.f32 %v242, %v553
        %555 = vmatmul.mubr.f32.gmra.mrb[0].mxu0 %v554
        %v556 = vpop.f32.mrb[0].mxu0
        %v557 = vadd.f32 %v459, %v556
        %v558 = vpop.f32.mrb[0].mxu0
        %v559 = vadd.f32 %v461, %v558
        %560 = vmatprep.mubr.f32.mxu0 0.0
        %v561 = vand.u32 %v245, 4294901760
        %v562 = vsub.f32 %v245, %v561
        %563 = vmatmul.mubr.f32.gmra.mrb[0].mxu0 %v562
        %v564 = vpop.f32.mrb[0].mxu0
        %v565 = vadd.f32 %v466, %v564
        %v566 = vpop.f32.mrb[0].mxu0
        %v567 = vadd.f32 %v468, %v566
        %568 = vmatprep.mubr.f32.mxu0 0.0
        %v569 = vand.u32 %v248, 4294901760
        %v570 = vsub.f32 %v248, %v569
        %571 = vmatmul.mubr.f32.gmra.mrb[0].mxu0 %v570
        %v572 = vpop.f32.mrb[0].mxu0
        %v573 = vadd.f32 %v473, %v572
        %v574 = vpop.f32.mrb[0].mxu0
        %v575 = vadd.f32 %v475, %v574
        %576 = vmatprep.mubr.f32.mxu0 0.0
        %v577 = vand.u32 %v251, 4294901760
        %v578 = vsub.f32 %v251, %v577
        %579 = vmatmul.mubr.f32.gmra.mrb[0].mxu0 %v578
        %v580 = vpop.f32.mrb[0].mxu0
        %v581 = vadd.f32 %v480, %v580
        %v582 = vpop.f32.mrb[0].mxu0
        %v583 = vadd.f32 %v482, %v582
        %584 = vdwg.mxu0
        %v585 = vand.u32 %v256, 4294901760
        %586 = vmatprep.subr.mxu0 %v585
        %v587 = vand.u32 %v254, 4294901760
        %588 = vmatpush1.msra.mxu0 %v587
        %589 = vmatprep.subr.mxu0 0.0
        %590 = vmatpush1.msra.mxu0 0.0
        %591 = vmatprep.subr.mxu0 0.0
        %592 = vmatpush1.msra.mxu0 0.0
        %593 = vmatprep.subr.mxu0 0.0
        %594 = vmatpush1.msra.mxu0 0.0
        %595 = vmatprep.subr.mxu0 0.0
        %596 = vmatpush1.msra.mxu0 0.0
        %597 = vmatprep.subr.mxu0 0.0
        %598 = vmatpush1.msra.mxu0 0.0
        %599 = vmatprep.subr.mxu0 0.0
        %600 = vmatpush1.msra.mxu0 0.0
        %601 = vmatprep.subr.mxu0 0.0
        %602 = vmatpush1.msra.mxu0 0.0
        %603 = vmatprep.subr.mxu0 0.0
        %604 = vmatpush1.msra.mxu0 0.0
        %605 = vmatprep.subr.mxu0 0.0
        %606 = vmatpush1.msra.mxu0 0.0
        %607 = vmatprep.subr.mxu0 0.0
        %608 = vmatpush1.msra.mxu0 0.0
        %609 = vmatprep.subr.mxu0 0.0
        %610 = vmatpush1.msra.mxu0 0.0
        %611 = vmatprep.subr.mxu0 0.0
        %612 = vmatpush1.msra.mxu0 0.0
        %613 = vmatprep.subr.mxu0 0.0
        %614 = vmatpush1.msra.mxu0 0.0
        %615 = vmatprep.subr.mxu0 0.0
        %616 = vmatpush1.msra.mxu0 0.0
        %617 = vmatprep.subr.mxu0 0.0
        %618 = vmatpush1.msra.mxu0 0.0
        %619 = vmatprep.subr.mxu0 0.0
        %620 = vmatpush1.msra.mxu0 0.0
        %621 = vmatprep.subr.mxu0 0.0
        %622 = vmatpush1.msra.mxu0 0.0
        %623 = vmatprep.subr.mxu0 0.0
        %624 = vmatpush1.msra.mxu0 0.0
        %625 = vmatprep.subr.mxu0 0.0
        %626 = vmatpush1.msra.mxu0 0.0
        %627 = vmatprep.subr.mxu0 0.0
        %628 = vmatpush1.msra.mxu0 0.0
        %629 = vmatprep.subr.mxu0 0.0
        %630 = vmatpush1.msra.mxu0 0.0
        %631 = vmatprep.subr.mxu0 0.0
        %632 = vmatpush1.msra.mxu0 0.0
        %633 = vmatprep.subr.mxu0 0.0
        %634 = vmatpush1.msra.mxu0 0.0
        %635 = vmatprep.subr.mxu0 0.0
        %636 = vmatpush1.msra.mxu0 0.0
        %637 = vmatprep.subr.mxu0 0.0
        %638 = vmatpush1.msra.mxu0 0.0
        %639 = vmatprep.subr.mxu0 0.0
        %640 = vmatpush1.msra.mxu0 0.0
        %641 = vmatprep.subr.mxu0 0.0
        %642 = vmatpush1.msra.mxu0 0.0
        %643 = vmatprep.subr.mxu0 0.0
        %644 = vmatpush1.msra.mxu0 0.0
        %645 = vmatprep.subr.mxu0 0.0
        %646 = vmatpush1.msra.mxu0 0.0
        %647 = vmatprep.subr.mxu0 0.0
        %648 = vmatpush1.msra.mxu0 0.0
        %649 = vmatprep.subr.mxu0 0.0
        %650 = vmatpush1.msra.mxu0 0.0
        %651 = vmatprep.mubr.f32.mxu0 0.0
        %v652 = vand.u32 %v242, 4294901760
        %v653 = vsub.f32 %v242, %v652
        %v654 = vand.u32 %v653, 4294901760
        %655 = vmatmul.mubr.f32.gmra.mrb[0].mxu0 %v654
        %v656 = vpop.f32.mrb[0].mxu0
        %v657 = vadd.f32 %v557, %v656
        %v658 = vpop.f32.mrb[0].mxu0
        %v659 = vadd.f32 %v559, %v658
        %660 = vmatprep.mubr.f32.mxu0 0.0
        %v661 = vand.u32 %v245, 4294901760
        %v662 = vsub.f32 %v245, %v661
        %v663 = vand.u32 %v662, 4294901760
        %664 = vmatmul.mubr.f32.gmra.mrb[0].mxu0 %v663
        %v665 = vpop.f32.mrb[0].mxu0
        %v666 = vadd.f32 %v565, %v665
        %v667 = vpop.f32.mrb[0].mxu0
        %v668 = vadd.f32 %v567, %v667
        %669 = vmatprep.mubr.f32.mxu0 0.0
        %v670 = vand.u32 %v248, 4294901760
        %v671 = vsub.f32 %v248, %v670
        %v672 = vand.u32 %v671, 4294901760
        %673 = vmatmul.mubr.f32.gmra.mrb[0].mxu0 %v672
        %v674 = vpop.f32.mrb[0].mxu0
        %v675 = vadd.f32 %v573, %v674
        %v676 = vpop.f32.mrb[0].mxu0
        %v677 = vadd.f32 %v575, %v676
        %678 = vmatprep.mubr.f32.mxu0 0.0
        %v679 = vand.u32 %v251, 4294901760
        %v680 = vsub.f32 %v251, %v679
        %v681 = vand.u32 %v680, 4294901760
        %682 = vmatmul.mubr.f32.gmra.mrb[0].mxu0 %v681
        %v683 = vpop.f32.mrb[0].mxu0
        %v684 = vadd.f32 %v581, %v683
        %v685 = vpop.f32.mrb[0].mxu0
        %v686 = vadd.f32 %v583, %v685
        %687 = vdwg.mxu0
        %v688 = vand.u32 %v256, 4294901760
        %v689 = vsub.f32 %v256, %v688
        %v690 = vand.u32 %v689, 4294901760
        %691 = vmatprep.subr.mxu0 %v690
        %v692 = vand.u32 %v254, 4294901760
        %v693 = vsub.f32 %v254, %v692
        %v694 = vand.u32 %v693, 4294901760
        %695 = vmatpush1.msra.mxu0 %v694
        %696 = vmatprep.subr.mxu0 0.0
        %697 = vmatpush1.msra.mxu0 0.0
        %698 = vmatprep.subr.mxu0 0.0
        %699 = vmatpush1.msra.mxu0 0.0
        %700 = vmatprep.subr.mxu0 0.0
        %701 = vmatpush1.msra.mxu0 0.0
        %702 = vmatprep.subr.mxu0 0.0
        %703 = vmatpush1.msra.mxu0 0.0
        %704 = vmatprep.subr.mxu0 0.0
        %705 = vmatpush1.msra.mxu0 0.0
        %706 = vmatprep.subr.mxu0 0.0
        %707 = vmatpush1.msra.mxu0 0.0
        %708 = vmatprep.subr.mxu0 0.0
        %709 = vmatpush1.msra.mxu0 0.0
        %710 = vmatprep.subr.mxu0 0.0
        %711 = vmatpush1.msra.mxu0 0.0
        %712 = vmatprep.subr.mxu0 0.0
        %713 = vmatpush1.msra.mxu0 0.0
        %714 = vmatprep.subr.mxu0 0.0
        %715 = vmatpush1.msra.mxu0 0.0
        %716 = vmatprep.subr.mxu0 0.0
        %717 = vmatpush1.msra.mxu0 0.0
        %718 = vmatprep.subr.mxu0 0.0
        %719 = vmatpush1.msra.mxu0 0.0
        %720 = vmatprep.subr.mxu0 0.0
        %721 = vmatpush1.msra.mxu0 0.0
        %722 = vmatprep.subr.mxu0 0.0
        %723 = vmatpush1.msra.mxu0 0.0
        %724 = vmatprep.subr.mxu0 0.0
        %725 = vmatpush1.msra.mxu0 0.0
        %726 = vmatprep.subr.mxu0 0.0
        %727 = vmatpush1.msra.mxu0 0.0
        %728 = vmatprep.subr.mxu0 0.0
        %729 = vmatpush1.msra.mxu0 0.0
        %730 = vmatprep.subr.mxu0 0.0
        %731 = vmatpush1.msra.mxu0 0.0
        %732 = vmatprep.subr.mxu0 0.0
        %733 = vmatpush1.msra.mxu0 0.0
        %734 = vmatprep.subr.mxu0 0.0
        %735 = vmatpush1.msra.mxu0 0.0
        %736 = vmatprep.subr.mxu0 0.0
        %737 = vmatpush1.msra.mxu0 0.0
        %738 = vmatprep.subr.mxu0 0.0
        %739 = vmatpush1.msra.mxu0 0.0
        %740 = vmatprep.subr.mxu0 0.0
        %741 = vmatpush1.msra.mxu0 0.0
        %742 = vmatprep.subr.mxu0 0.0
        %743 = vmatpush1.msra.mxu0 0.0
        %744 = vmatprep.subr.mxu0 0.0
        %745 = vmatpush1.msra.mxu0 0.0
        %746 = vmatprep.subr.mxu0 0.0
        %747 = vmatpush1.msra.mxu0 0.0
        %748 = vmatprep.subr.mxu0 0.0
        %749 = vmatpush1.msra.mxu0 0.0
        %750 = vmatprep.subr.mxu0 0.0
        %751 = vmatpush1.msra.mxu0 0.0
        %752 = vmatprep.subr.mxu0 0.0
        %753 = vmatpush1.msra.mxu0 0.0
        %754 = vmatprep.subr.mxu0 0.0
        %755 = vmatpush1.msra.mxu0 0.0
        %756 = vmatprep.subr.mxu0 0.0
        %757 = vmatpush1.msra.mxu0 0.0
        %758 = vmatprep.mubr.f32.mxu0 0.0
        %v759 = vand.u32 %v242, 4294901760
        %760 = vmatmul.mubr.f32.gmra.mrb[0].mxu0 %v759
        %v761 = vpop.f32.mrb[0].mxu0
        %v762 = vadd.f32 %v657, %v761
        %v763 = vpop.f32.mrb[0].mxu0
        %v764 = vadd.f32 %v659, %v763
        %765 = vmatprep.mubr.f32.mxu0 0.0
        %v766 = vand.u32 %v245, 4294901760
        %767 = vmatmul.mubr.f32.gmra.mrb[0].mxu0 %v766
        %v768 = vpop.f32.mrb[0].mxu0
        %v769 = vadd.f32 %v666, %v768
        %v770 = vpop.f32.mrb[0].mxu0
        %v771 = vadd.f32 %v668, %v770
        %772 = vmatprep.mubr.f32.mxu0 0.0
        %v773 = vand.u32 %v248, 4294901760
        %774 = vmatmul.mubr.f32.gmra.mrb[0].mxu0 %v773
        %v775 = vpop.f32.mrb[0].mxu0
        %v776 = vadd.f32 %v675, %v775
        %v777 = vpop.f32.mrb[0].mxu0
        %v778 = vadd.f32 %v677, %v777
        %779 = vmatprep.mubr.f32.mxu0 0.0
        %v780 = vand.u32 %v251, 4294901760
        %781 = vmatmul.mubr.f32.gmra.mrb[0].mxu0 %v780
        %v782 = vpop.f32.mrb[0].mxu0
        %v783 = vadd.f32 %v684, %v782
        %v784 = vpop.f32.mrb[0].mxu0
        %v785 = vadd.f32 %v686, %v784
        %786 = vdwg.mxu0
        %v787 = vand.u32 %v256, 4294901760
        %788 = vmatprep.subr.mxu0 %v787
        %v789 = vand.u32 %v254, 4294901760
        %790 = vmatpush1.msra.mxu0 %v789
        %791 = vmatprep.subr.mxu0 0.0
        %792 = vmatpush1.msra.mxu0 0.0
        %793 = vmatprep.subr.mxu0 0.0
        %794 = vmatpush1.msra.mxu0 0.0
        %795 = vmatprep.subr.mxu0 0.0
        %796 = vmatpush1.msra.mxu0 0.0
        %797 = vmatprep.subr.mxu0 0.0
        %798 = vmatpush1.msra.mxu0 0.0
        %799 = vmatprep.subr.mxu0 0.0
        %800 = vmatpush1.msra.mxu0 0.0
        %801 = vmatprep.subr.mxu0 0.0
        %802 = vmatpush1.msra.mxu0 0.0
        %803 = vmatprep.subr.mxu0 0.0
        %804 = vmatpush1.msra.mxu0 0.0
        %805 = vmatprep.subr.mxu0 0.0
        %806 = vmatpush1.msra.mxu0 0.0
        %807 = vmatprep.subr.mxu0 0.0
        %808 = vmatpush1.msra.mxu0 0.0
        %809 = vmatprep.subr.mxu0 0.0
        %810 = vmatpush1.msra.mxu0 0.0
        %811 = vmatprep.subr.mxu0 0.0
        %812 = vmatpush1.msra.mxu0 0.0
        %813 = vmatprep.subr.mxu0 0.0
        %814 = vmatpush1.msra.mxu0 0.0
        %815 = vmatprep.subr.mxu0 0.0
        %816 = vmatpush1.msra.mxu0 0.0
        %817 = vmatprep.subr.mxu0 0.0
        %818 = vmatpush1.msra.mxu0 0.0
        %819 = vmatprep.subr.mxu0 0.0
        %820 = vmatpush1.msra.mxu0 0.0
        %821 = vmatprep.subr.mxu0 0.0
        %822 = vmatpush1.msra.mxu0 0.0
        %823 = vmatprep.subr.mxu0 0.0
        %824 = vmatpush1.msra.mxu0 0.0
        %825 = vmatprep.subr.mxu0 0.0
        %826 = vmatpush1.msra.mxu0 0.0
        %827 = vmatprep.subr.mxu0 0.0
        %828 = vmatpush1.msra.mxu0 0.0
        %829 = vmatprep.subr.mxu0 0.0
        %830 = vmatpush1.msra.mxu0 0.0
        %831 = vmatprep.subr.mxu0 0.0
        %832 = vmatpush1.msra.mxu0 0.0
        %833 = vmatprep.subr.mxu0 0.0
        %834 = vmatpush1.msra.mxu0 0.0
        %835 = vmatprep.subr.mxu0 0.0
        %836 = vmatpush1.msra.mxu0 0.0
        %837 = vmatprep.subr.mxu0 0.0
        %838 = vmatpush1.msra.mxu0 0.0
        %839 = vmatprep.subr.mxu0 0.0
        %840 = vmatpush1.msra.mxu0 0.0
        %841 = vmatprep.subr.mxu0 0.0
        %842 = vmatpush1.msra.mxu0 0.0
        %843 = vmatprep.subr.mxu0 0.0
        %844 = vmatpush1.msra.mxu0 0.0
        %845 = vmatprep.subr.mxu0 0.0
        %846 = vmatpush1.msra.mxu0 0.0
        %847 = vmatprep.subr.mxu0 0.0
        %848 = vmatpush1.msra.mxu0 0.0
        %849 = vmatprep.subr.mxu0 0.0
        %850 = vmatpush1.msra.mxu0 0.0
        %851 = vmatprep.subr.mxu0 0.0
        %852 = vmatpush1.msra.mxu0 0.0
        %853 = vmatprep.mubr.f32.mxu0 0.0
        %v854 = vand.u32 %v242, 4294901760
        %855 = vmatmul.mubr.f32.gmra.mrb[0].mxu0 %v854
        %v856 = vpop.f32.mrb[0].mxu0
        %v857 = vadd.f32 %v762, %v856
        %v858 = vpop.f32.mrb[0].mxu0
        %v859 = vadd.f32 %v764, %v858
        %860 = vmatprep.mubr.f32.mxu0 0.0
        %v861 = vand.u32 %v245, 4294901760
        %862 = vmatmul.mubr.f32.gmra.mrb[0].mxu0 %v861
        %v863 = vpop.f32.mrb[0].mxu0
        %v864 = vadd.f32 %v769, %v863
        %v865 = vpop.f32.mrb[0].mxu0
        %v866 = vadd.f32 %v771, %v865
        %867 = vmatprep.mubr.f32.mxu0 0.0
        %v868 = vand.u32 %v248, 4294901760
        %869 = vmatmul.mubr.f32.gmra.mrb[0].mxu0 %v868
        %v870 = vpop.f32.mrb[0].mxu0
        %v871 = vadd.f32 %v776, %v870
        %v872 = vpop.f32.mrb[0].mxu0
        %v873 = vadd.f32 %v778, %v872
        %874 = vmatprep.mubr.f32.mxu0 0.0
        %v875 = vand.u32 %v251, 4294901760
        %876 = vmatmul.mubr.f32.gmra.mrb[0].mxu0 %v875
        %v877 = vpop.f32.mrb[0].mxu0
        %v878 = vadd.f32 %v783, %v877
        %v879 = vpop.f32.mrb[0].mxu0
        %v880 = vadd.f32 %v785, %v879
        %881 = vdwg.mxu0
        %v882 = vand.u32 %v260, 4294901760
        %883 = vmatprep.subr.mxu0 %v882
        %v884 = vand.u32 %v258, 4294901760
        %885 = vmatpush1.msra.mxu0 %v884
        %886 = vmatprep.subr.mxu0 0.0
        %887 = vmatpush1.msra.mxu0 0.0
        %888 = vmatprep.subr.mxu0 0.0
        %889 = vmatpush1.msra.mxu0 0.0
        %890 = vmatprep.subr.mxu0 0.0
        %891 = vmatpush1.msra.mxu0 0.0
        %892 = vmatprep.subr.mxu0 0.0
        %893 = vmatpush1.msra.mxu0 0.0
        %894 = vmatprep.subr.mxu0 0.0
        %895 = vmatpush1.msra.mxu0 0.0
        %896 = vmatprep.subr.mxu0 0.0
        %897 = vmatpush1.msra.mxu0 0.0
        %898 = vmatprep.subr.mxu0 0.0
        %899 = vmatpush1.msra.mxu0 0.0
        %900 = vmatprep.subr.mxu0 0.0
        %901 = vmatpush1.msra.mxu0 0.0
        %902 = vmatprep.subr.mxu0 0.0
        %903 = vmatpush1.msra.mxu0 0.0
        %904 = vmatprep.subr.mxu0 0.0
        %905 = vmatpush1.msra.mxu0 0.0
        %906 = vmatprep.subr.mxu0 0.0
        %907 = vmatpush1.msra.mxu0 0.0
        %908 = vmatprep.subr.mxu0 0.0
        %909 = vmatpush1.msra.mxu0 0.0
        %910 = vmatprep.subr.mxu0 0.0
        %911 = vmatpush1.msra.mxu0 0.0
        %912 = vmatprep.subr.mxu0 0.0
        %913 = vmatpush1.msra.mxu0 0.0
        %914 = vmatprep.subr.mxu0 0.0
        %915 = vmatpush1.msra.mxu0 0.0
        %916 = vmatprep.subr.mxu0 0.0
        %917 = vmatpush1.msra.mxu0 0.0
        %918 = vmatprep.subr.mxu0 0.0
        %919 = vmatpush1.msra.mxu0 0.0
        %920 = vmatprep.subr.mxu0 0.0
        %921 = vmatpush1.msra.mxu0 0.0
        %922 = vmatprep.subr.mxu0 0.0
        %923 = vmatpush1.msra.mxu0 0.0
        %924 = vmatprep.subr.mxu0 0.0
        %925 = vmatpush1.msra.mxu0 0.0
        %926 = vmatprep.subr.mxu0 0.0
        %927 = vmatpush1.msra.mxu0 0.0
        %928 = vmatprep.subr.mxu0 0.0
        %929 = vmatpush1.msra.mxu0 0.0
        %930 = vmatprep.subr.mxu0 0.0
        %931 = vmatpush1.msra.mxu0 0.0
        %932 = vmatprep.subr.mxu0 0.0
        %933 = vmatpush1.msra.mxu0 0.0
        %934 = vmatprep.subr.mxu0 0.0
        %935 = vmatpush1.msra.mxu0 0.0
        %936 = vmatprep.subr.mxu0 0.0
        %937 = vmatpush1.msra.mxu0 0.0
        %938 = vmatprep.subr.mxu0 0.0
        %939 = vmatpush1.msra.mxu0 0.0
        %940 = vmatprep.subr.mxu0 0.0
        %941 = vmatpush1.msra.mxu0 0.0
        %942 = vmatprep.subr.mxu0 0.0
        %943 = vmatpush1.msra.mxu0 0.0
        %944 = vmatprep.subr.mxu0 0.0
        %945 = vmatpush1.msra.mxu0 0.0
        %946 = vmatprep.subr.mxu0 0.0
        %947 = vmatpush1.msra.mxu0 0.0
        %948 = vmatprep.mubr.f32.mxu0 0.0
        %v949 = vand.u32 %v242, 4294901760
        %v950 = vsub.f32 %v242, %v949
        %v951 = vand.u32 %v950, 4294901760
        %v952 = vsub.f32 %v950, %v951
        %v953 = vand.u32 %v952, 4294901760
        %954 = vmatmul.mubr.f32.gmra.mrb[0].mxu0 %v953
        %v955 = vpop.f32.mrb[0].mxu0
        %v956 = vadd.f32 %v215, %v955
        %v957 = vpop.f32.mrb[0].mxu0
        %v958 = vadd.f32 %v215, %v957
        %959 = vmatprep.mubr.f32.mxu0 0.0
        %v960 = vand.u32 %v245, 4294901760
        %v961 = vsub.f32 %v245, %v960
        %v962 = vand.u32 %v961, 4294901760
        %v963 = vsub.f32 %v961, %v962
        %v964 = vand.u32 %v963, 4294901760
        %965 = vmatmul.mubr.f32.gmra.mrb[0].mxu0 %v964
        %v966 = vpop.f32.mrb[0].mxu0
        %v967 = vadd.f32 %v220, %v966
        %v968 = vpop.f32.mrb[0].mxu0
        %v969 = vadd.f32 %v220, %v968
        %970 = vmatprep.mubr.f32.mxu0 0.0
        %v971 = vand.u32 %v248, 4294901760
        %v972 = vsub.f32 %v248, %v971
        %v973 = vand.u32 %v972, 4294901760
        %v974 = vsub.f32 %v972, %v973
        %v975 = vand.u32 %v974, 4294901760
        %976 = vmatmul.mubr.f32.gmra.mrb[0].mxu0 %v975
        %v977 = vpop.f32.mrb[0].mxu0
        %v978 = vadd.f32 %v225, %v977
        %v979 = vpop.f32.mrb[0].mxu0
        %v980 = vadd.f32 %v225, %v979
        %981 = vmatprep.mubr.f32.mxu0 0.0
        %v982 = vand.u32 %v251, 4294901760
        %v983 = vsub.f32 %v251, %v982
        %v984 = vand.u32 %v983, 4294901760
        %v985 = vsub.f32 %v983, %v984
        %v986 = vand.u32 %v985, 4294901760
        %987 = vmatmul.mubr.f32.gmra.mrb[0].mxu0 %v986
        %v988 = vpop.f32.mrb[0].mxu0
        %v989 = vadd.f32 %v230, %v988
        %v990 = vpop.f32.mrb[0].mxu0
        %v991 = vadd.f32 %v230, %v990
        %992 = vdwg.mxu0
        %v993 = vand.u32 %v260, 4294901760
        %v994 = vsub.f32 %v260, %v993
        %v995 = vand.u32 %v994, 4294901760
        %v996 = vsub.f32 %v994, %v995
        %v997 = vand.u32 %v996, 4294901760
        %998 = vmatprep.subr.mxu0 %v997
        %v999 = vand.u32 %v258, 4294901760
        %v1000 = vsub.f32 %v258, %v999
        %v1001 = vand.u32 %v1000, 4294901760
        %v1002 = vsub.f32 %v1000, %v1001
        %v1003 = vand.u32 %v1002, 4294901760
        %1004 = vmatpush1.msra.mxu0 %v1003
        %1005 = vmatprep.subr.mxu0 0.0
        %1006 = vmatpush1.msra.mxu0 0.0
        %1007 = vmatprep.subr.mxu0 0.0
        %1008 = vmatpush1.msra.mxu0 0.0
        %1009 = vmatprep.subr.mxu0 0.0
        %1010 = vmatpush1.msra.mxu0 0.0
        %1011 = vmatprep.subr.mxu0 0.0
        %1012 = vmatpush1.msra.mxu0 0.0
        %1013 = vmatprep.subr.mxu0 0.0
        %1014 = vmatpush1.msra.mxu0 0.0
        %1015 = vmatprep.subr.mxu0 0.0
        %1016 = vmatpush1.msra.mxu0 0.0
        %1017 = vmatprep.subr.mxu0 0.0
        %1018 = vmatpush1.msra.mxu0 0.0
        %1019 = vmatprep.subr.mxu0 0.0
        %1020 = vmatpush1.msra.mxu0 0.0
        %1021 = vmatprep.subr.mxu0 0.0
        %1022 = vmatpush1.msra.mxu0 0.0
        %1023 = vmatprep.subr.mxu0 0.0
        %1024 = vmatpush1.msra.mxu0 0.0
        %1025 = vmatprep.subr.mxu0 0.0
        %1026 = vmatpush1.msra.mxu0 0.0
        %1027 = vmatprep.subr.mxu0 0.0
        %1028 = vmatpush1.msra.mxu0 0.0
        %1029 = vmatprep.subr.mxu0 0.0
        %1030 = vmatpush1.msra.mxu0 0.0
        %1031 = vmatprep.subr.mxu0 0.0
        %1032 = vmatpush1.msra.mxu0 0.0
        %1033 = vmatprep.subr.mxu0 0.0
        %1034 = vmatpush1.msra.mxu0 0.0
        %1035 = vmatprep.subr.mxu0 0.0
        %1036 = vmatpush1.msra.mxu0 0.0
        %1037 = vmatprep.subr.mxu0 0.0
        %1038 = vmatpush1.msra.mxu0 0.0
        %1039 = vmatprep.subr.mxu0 0.0
        %1040 = vmatpush1.msra.mxu0 0.0
        %1041 = vmatprep.subr.mxu0 0.0
        %1042 = vmatpush1.msra.mxu0 0.0
        %1043 = vmatprep.subr.mxu0 0.0
        %1044 = vmatpush1.msra.mxu0 0.0
        %1045 = vmatprep.subr.mxu0 0.0
        %1046 = vmatpush1.msra.mxu0 0.0
        %1047 = vmatprep.subr.mxu0 0.0
        %1048 = vmatpush1.msra.mxu0 0.0
        %1049 = vmatprep.subr.mxu0 0.0
        %1050 = vmatpush1.msra.mxu0 0.0
        %1051 = vmatprep.subr.mxu0 0.0
        %1052 = vmatpush1.msra.mxu0 0.0
        %1053 = vmatprep.subr.mxu0 0.0
        %1054 = vmatpush1.msra.mxu0 0.0
        %1055 = vmatprep.subr.mxu0 0.0
        %1056 = vmatpush1.msra.mxu0 0.0
        %1057 = vmatprep.subr.mxu0 0.0
        %1058 = vmatpush1.msra.mxu0 0.0
        %1059 = vmatprep.subr.mxu0 0.0
        %1060 = vmatpush1.msra.mxu0 0.0
        %1061 = vmatprep.subr.mxu0 0.0
        %1062 = vmatpush1.msra.mxu0 0.0
        %1063 = vmatprep.subr.mxu0 0.0
        %1064 = vmatpush1.msra.mxu0 0.0
        %1065 = vmatprep.subr.mxu0 0.0
        %1066 = vmatpush1.msra.mxu0 0.0
        %1067 = vmatprep.mubr.f32.mxu0 0.0
        %v1068 = vand.u32 %v242, 4294901760
        %1069 = vmatmul.mubr.f32.gmra.mrb[0].mxu0 %v1068
        %v1070 = vpop.f32.mrb[0].mxu0
        %v1071 = vadd.f32 %v956, %v1070
        %v1072 = vpop.f32.mrb[0].mxu0
        %v1073 = vadd.f32 %v958, %v1072
        %1074 = vmatprep.mubr.f32.mxu0 0.0
        %v1075 = vand.u32 %v245, 4294901760
        %1076 = vmatmul.mubr.f32.gmra.mrb[0].mxu0 %v1075
        %v1077 = vpop.f32.mrb[0].mxu0
        %v1078 = vadd.f32 %v967, %v1077
        %v1079 = vpop.f32.mrb[0].mxu0
        %v1080 = vadd.f32 %v969, %v1079
        %1081 = vmatprep.mubr.f32.mxu0 0.0
        %v1082 = vand.u32 %v248, 4294901760
        %1083 = vmatmul.mubr.f32.gmra.mrb[0].mxu0 %v1082
        %v1084 = vpop.f32.mrb[0].mxu0
        %v1085 = vadd.f32 %v978, %v1084
        %v1086 = vpop.f32.mrb[0].mxu0
        %v1087 = vadd.f32 %v980, %v1086
        %1088 = vmatprep.mubr.f32.mxu0 0.0
        %v1089 = vand.u32 %v251, 4294901760
        %1090 = vmatmul.mubr.f32.gmra.mrb[0].mxu0 %v1089
        %v1091 = vpop.f32.mrb[0].mxu0
        %v1092 = vadd.f32 %v989, %v1091
        %v1093 = vpop.f32.mrb[0].mxu0
        %v1094 = vadd.f32 %v991, %v1093
        %1095 = vdwg.mxu0
        %v1096 = vand.u32 %v260, 4294901760
        %v1097 = vsub.f32 %v260, %v1096
        %1098 = vmatprep.subr.mxu0 %v1097
        %v1099 = vand.u32 %v258, 4294901760
        %v1100 = vsub.f32 %v258, %v1099
        %1101 = vmatpush1.msra.mxu0 %v1100
        %1102 = vmatprep.subr.mxu0 0.0
        %1103 = vmatpush1.msra.mxu0 0.0
        %1104 = vmatprep.subr.mxu0 0.0
        %1105 = vmatpush1.msra.mxu0 0.0
        %1106 = vmatprep.subr.mxu0 0.0
        %1107 = vmatpush1.msra.mxu0 0.0
        %1108 = vmatprep.subr.mxu0 0.0
        %1109 = vmatpush1.msra.mxu0 0.0
        %1110 = vmatprep.subr.mxu0 0.0
        %1111 = vmatpush1.msra.mxu0 0.0
        %1112 = vmatprep.subr.mxu0 0.0
        %1113 = vmatpush1.msra.mxu0 0.0
        %1114 = vmatprep.subr.mxu0 0.0
        %1115 = vmatpush1.msra.mxu0 0.0
        %1116 = vmatprep.subr.mxu0 0.0
        %1117 = vmatpush1.msra.mxu0 0.0
        %1118 = vmatprep.subr.mxu0 0.0
        %1119 = vmatpush1.msra.mxu0 0.0
        %1120 = vmatprep.subr.mxu0 0.0
        %1121 = vmatpush1.msra.mxu0 0.0
        %1122 = vmatprep.subr.mxu0 0.0
        %1123 = vmatpush1.msra.mxu0 0.0
        %1124 = vmatprep.subr.mxu0 0.0
        %1125 = vmatpush1.msra.mxu0 0.0
        %1126 = vmatprep.subr.mxu0 0.0
        %1127 = vmatpush1.msra.mxu0 0.0
        %1128 = vmatprep.subr.mxu0 0.0
        %1129 = vmatpush1.msra.mxu0 0.0
        %1130 = vmatprep.subr.mxu0 0.0
        %1131 = vmatpush1.msra.mxu0 0.0
        %1132 = vmatprep.subr.mxu0 0.0
        %1133 = vmatpush1.msra.mxu0 0.0
        %1134 = vmatprep.subr.mxu0 0.0
        %1135 = vmatpush1.msra.mxu0 0.0
        %1136 = vmatprep.subr.mxu0 0.0
        %1137 = vmatpush1.msra.mxu0 0.0
        %1138 = vmatprep.subr.mxu0 0.0
        %1139 = vmatpush1.msra.mxu0 0.0
        %1140 = vmatprep.subr.mxu0 0.0
        %1141 = vmatpush1.msra.mxu0 0.0
        %1142 = vmatprep.subr.mxu0 0.0
        %1143 = vmatpush1.msra.mxu0 0.0
        %1144 = vmatprep.subr.mxu0 0.0
        %1145 = vmatpush1.msra.mxu0 0.0
        %1146 = vmatprep.subr.mxu0 0.0
        %1147 = vmatpush1.msra.mxu0 0.0
        %1148 = vmatprep.subr.mxu0 0.0
        %1149 = vmatpush1.msra.mxu0 0.0
        %1150 = vmatprep.subr.mxu0 0.0
        %1151 = vmatpush1.msra.mxu0 0.0
        %1152 = vmatprep.subr.mxu0 0.0
        %1153 = vmatpush1.msra.mxu0 0.0
        %1154 = vmatprep.subr.mxu0 0.0
        %1155 = vmatpush1.msra.mxu0 0.0
        %1156 = vmatprep.subr.mxu0 0.0
        %1157 = vmatpush1.msra.mxu0 0.0
        %1158 = vmatprep.subr.mxu0 0.0
        %1159 = vmatpush1.msra.mxu0 0.0
        %1160 = vmatprep.subr.mxu0 0.0
        %1161 = vmatpush1.msra.mxu0 0.0
        %1162 = vmatprep.subr.mxu0 0.0
        %1163 = vmatpush1.msra.mxu0 0.0
        %1164 = vmatprep.mubr.f32.mxu0 0.0
        %v1165 = vand.u32 %v242, 4294901760
        %v1166 = vsub.f32 %v242, %v1165
        %1167 = vmatmul.mubr.f32.gmra.mrb[0].mxu0 %v1166
        %v1168 = vpop.f32.mrb[0].mxu0
        %v1169 = vadd.f32 %v1071, %v1168
        %v1170 = vpop.f32.mrb[0].mxu0
        %v1171 = vadd.f32 %v1073, %v1170
        %1172 = vmatprep.mubr.f32.mxu0 0.0
        %v1173 = vand.u32 %v245, 4294901760
        %v1174 = vsub.f32 %v245, %v1173
        %1175 = vmatmul.mubr.f32.gmra.mrb[0].mxu0 %v1174
        %v1176 = vpop.f32.mrb[0].mxu0
        %v1177 = vadd.f32 %v1078, %v1176
        %v1178 = vpop.f32.mrb[0].mxu0
        %v1179 = vadd.f32 %v1080, %v1178
        %1180 = vmatprep.mubr.f32.mxu0 0.0
        %v1181 = vand.u32 %v248, 4294901760
        %v1182 = vsub.f32 %v248, %v1181
        %1183 = vmatmul.mubr.f32.gmra.mrb[0].mxu0 %v1182
        %v1184 = vpop.f32.mrb[0].mxu0
        %v1185 = vadd.f32 %v1085, %v1184
        %v1186 = vpop.f32.mrb[0].mxu0
        %v1187 = vadd.f32 %v1087, %v1186
        %1188 = vmatprep.mubr.f32.mxu0 0.0
        %v1189 = vand.u32 %v251, 4294901760
        %v1190 = vsub.f32 %v251, %v1189
        %1191 = vmatmul.mubr.f32.gmra.mrb[0].mxu0 %v1190
        %v1192 = vpop.f32.mrb[0].mxu0
        %v1193 = vadd.f32 %v1092, %v1192
        %v1194 = vpop.f32.mrb[0].mxu0
        %v1195 = vadd.f32 %v1094, %v1194
        %1196 = vdwg.mxu0
        %v1197 = vand.u32 %v260, 4294901760
        %1198 = vmatprep.subr.mxu0 %v1197
        %v1199 = vand.u32 %v258, 4294901760
        %1200 = vmatpush1.msra.mxu0 %v1199
        %1201 = vmatprep.subr.mxu0 0.0
        %1202 = vmatpush1.msra.mxu0 0.0
        %1203 = vmatprep.subr.mxu0 0.0
        %1204 = vmatpush1.msra.mxu0 0.0
        %1205 = vmatprep.subr.mxu0 0.0
        %1206 = vmatpush1.msra.mxu0 0.0
        %1207 = vmatprep.subr.mxu0 0.0
        %1208 = vmatpush1.msra.mxu0 0.0
        %1209 = vmatprep.subr.mxu0 0.0
        %1210 = vmatpush1.msra.mxu0 0.0
        %1211 = vmatprep.subr.mxu0 0.0
        %1212 = vmatpush1.msra.mxu0 0.0
        %1213 = vmatprep.subr.mxu0 0.0
        %1214 = vmatpush1.msra.mxu0 0.0
        %1215 = vmatprep.subr.mxu0 0.0
        %1216 = vmatpush1.msra.mxu0 0.0
        %1217 = vmatprep.subr.mxu0 0.0
        %1218 = vmatpush1.msra.mxu0 0.0
        %1219 = vmatprep.subr.mxu0 0.0
        %1220 = vmatpush1.msra.mxu0 0.0
        %1221 = vmatprep.subr.mxu0 0.0
        %1222 = vmatpush1.msra.mxu0 0.0
        %1223 = vmatprep.subr.mxu0 0.0
        %1224 = vmatpush1.msra.mxu0 0.0
        %1225 = vmatprep.subr.mxu0 0.0
        %1226 = vmatpush1.msra.mxu0 0.0
        %1227 = vmatprep.subr.mxu0 0.0
        %1228 = vmatpush1.msra.mxu0 0.0
        %1229 = vmatprep.subr.mxu0 0.0
        %1230 = vmatpush1.msra.mxu0 0.0
        %1231 = vmatprep.subr.mxu0 0.0
        %1232 = vmatpush1.msra.mxu0 0.0
        %1233 = vmatprep.subr.mxu0 0.0
        %1234 = vmatpush1.msra.mxu0 0.0
        %1235 = vmatprep.subr.mxu0 0.0
        %1236 = vmatpush1.msra.mxu0 0.0
        %1237 = vmatprep.subr.mxu0 0.0
        %1238 = vmatpush1.msra.mxu0 0.0
        %1239 = vmatprep.subr.mxu0 0.0
        %1240 = vmatpush1.msra.mxu0 0.0
        %1241 = vmatprep.subr.mxu0 0.0
        %1242 = vmatpush1.msra.mxu0 0.0
        %1243 = vmatprep.subr.mxu0 0.0
        %1244 = vmatpush1.msra.mxu0 0.0
        %1245 = vmatprep.subr.mxu0 0.0
        %1246 = vmatpush1.msra.mxu0 0.0
        %1247 = vmatprep.subr.mxu0 0.0
        %1248 = vmatpush1.msra.mxu0 0.0
        %1249 = vmatprep.subr.mxu0 0.0
        %1250 = vmatpush1.msra.mxu0 0.0
        %1251 = vmatprep.subr.mxu0 0.0
        %1252 = vmatpush1.msra.mxu0 0.0
        %1253 = vmatprep.subr.mxu0 0.0
        %1254 = vmatpush1.msra.mxu0 0.0
        %1255 = vmatprep.subr.mxu0 0.0
        %1256 = vmatpush1.msra.mxu0 0.0
        %1257 = vmatprep.subr.mxu0 0.0
        %1258 = vmatpush1.msra.mxu0 0.0
        %1259 = vmatprep.subr.mxu0 0.0
        %1260 = vmatpush1.msra.mxu0 0.0
        %1261 = vmatprep.subr.mxu0 0.0
        %1262 = vmatpush1.msra.mxu0 0.0
        %1263 = vmatprep.mubr.f32.mxu0 0.0
        %v1264 = vand.u32 %v242, 4294901760
        %v1265 = vsub.f32 %v242, %v1264
        %v1266 = vand.u32 %v1265, 4294901760
        %1267 = vmatmul.mubr.f32.gmra.mrb[0].mxu0 %v1266
        %v1268 = vpop.f32.mrb[0].mxu0
        %v1269 = vadd.f32 %v1169, %v1268
        %v1270 = vpop.f32.mrb[0].mxu0
        %v1271 = vadd.f32 %v1171, %v1270
        %1272 = vmatprep.mubr.f32.mxu0 0.0
        %v1273 = vand.u32 %v245, 4294901760
        %v1274 = vsub.f32 %v245, %v1273
        %v1275 = vand.u32 %v1274, 4294901760
        %1276 = vmatmul.mubr.f32.gmra.mrb[0].mxu0 %v1275
        %v1277 = vpop.f32.mrb[0].mxu0
        %v1278 = vadd.f32 %v1177, %v1277
        %v1279 = vpop.f32.mrb[0].mxu0
        %v1280 = vadd.f32 %v1179, %v1279
        %1281 = vmatprep.mubr.f32.mxu0 0.0
        %v1282 = vand.u32 %v248, 4294901760
        %v1283 = vsub.f32 %v248, %v1282
        %v1284 = vand.u32 %v1283, 4294901760
        %1285 = vmatmul.mubr.f32.gmra.mrb[0].mxu0 %v1284
        %v1286 = vpop.f32.mrb[0].mxu0
        %v1287 = vadd.f32 %v1185, %v1286
        %v1288 = vpop.f32.mrb[0].mxu0
        %v1289 = vadd.f32 %v1187, %v1288
        %1290 = vmatprep.mubr.f32.mxu0 0.0
        %v1291 = vand.u32 %v251, 4294901760
        %v1292 = vsub.f32 %v251, %v1291
        %v1293 = vand.u32 %v1292, 4294901760
        %1294 = vmatmul.mubr.f32.gmra.mrb[0].mxu0 %v1293
        %v1295 = vpop.f32.mrb[0].mxu0
        %v1296 = vadd.f32 %v1193, %v1295
        %v1297 = vpop.f32.mrb[0].mxu0
        %v1298 = vadd.f32 %v1195, %v1297
        %1299 = vdwg.mxu0
        %v1300 = vand.u32 %v260, 4294901760
        %v1301 = vsub.f32 %v260, %v1300
        %v1302 = vand.u32 %v1301, 4294901760
        %1303 = vmatprep.subr.mxu0 %v1302
        %v1304 = vand.u32 %v258, 4294901760
        %v1305 = vsub.f32 %v258, %v1304
        %v1306 = vand.u32 %v1305, 4294901760
        %1307 = vmatpush1.msra.mxu0 %v1306
        %1308 = vmatprep.subr.mxu0 0.0
        %1309 = vmatpush1.msra.mxu0 0.0
        %1310 = vmatprep.subr.mxu0 0.0
        %1311 = vmatpush1.msra.mxu0 0.0
        %1312 = vmatprep.subr.mxu0 0.0
        %1313 = vmatpush1.msra.mxu0 0.0
        %1314 = vmatprep.subr.mxu0 0.0
        %1315 = vmatpush1.msra.mxu0 0.0
        %1316 = vmatprep.subr.mxu0 0.0
        %1317 = vmatpush1.msra.mxu0 0.0
        %1318 = vmatprep.subr.mxu0 0.0
        %1319 = vmatpush1.msra.mxu0 0.0
        %1320 = vmatprep.subr.mxu0 0.0
        %1321 = vmatpush1.msra.mxu0 0.0
        %1322 = vmatprep.subr.mxu0 0.0
        %1323 = vmatpush1.msra.mxu0 0.0
        %1324 = vmatprep.subr.mxu0 0.0
        %1325 = vmatpush1.msra.mxu0 0.0
        %1326 = vmatprep.subr.mxu0 0.0
        %1327 = vmatpush1.msra.mxu0 0.0
        %1328 = vmatprep.subr.mxu0 0.0
        %1329 = vmatpush1.msra.mxu0 0.0
        %1330 = vmatprep.subr.mxu0 0.0
        %1331 = vmatpush1.msra.mxu0 0.0
        %1332 = vmatprep.subr.mxu0 0.0
        %1333 = vmatpush1.msra.mxu0 0.0
        %1334 = vmatprep.subr.mxu0 0.0
        %1335 = vmatpush1.msra.mxu0 0.0
        %1336 = vmatprep.subr.mxu0 0.0
        %1337 = vmatpush1.msra.mxu0 0.0
        %1338 = vmatprep.subr.mxu0 0.0
        %1339 = vmatpush1.msra.mxu0 0.0
        %1340 = vmatprep.subr.mxu0 0.0
        %1341 = vmatpush1.msra.mxu0 0.0
        %1342 = vmatprep.subr.mxu0 0.0
        %1343 = vmatpush1.msra.mxu0 0.0
        %1344 = vmatprep.subr.mxu0 0.0
        %1345 = vmatpush1.msra.mxu0 0.0
        %1346 = vmatprep.subr.mxu0 0.0
        %1347 = vmatpush1.msra.mxu0 0.0
        %1348 = vmatprep.subr.mxu0 0.0
        %1349 = vmatpush1.msra.mxu0 0.0
        %1350 = vmatprep.subr.mxu0 0.0
        %1351 = vmatpush1.msra.mxu0 0.0
        %1352 = vmatprep.subr.mxu0 0.0
        %1353 = vmatpush1.msra.mxu0 0.0
        %1354 = vmatprep.subr.mxu0 0.0
        %1355 = vmatpush1.msra.mxu0 0.0
        %1356 = vmatprep.subr.mxu0 0.0
        %1357 = vmatpush1.msra.mxu0 0.0
        %1358 = vmatprep.subr.mxu0 0.0
        %1359 = vmatpush1.msra.mxu0 0.0
        %1360 = vmatprep.subr.mxu0 0.0
        %1361 = vmatpush1.msra.mxu0 0.0
        %1362 = vmatprep.subr.mxu0 0.0
        %1363 = vmatpush1.msra.mxu0 0.0
        %1364 = vmatprep.subr.mxu0 0.0
        %1365 = vmatpush1.msra.mxu0 0.0
        %1366 = vmatprep.subr.mxu0 0.0
        %1367 = vmatpush1.msra.mxu0 0.0
        %1368 = vmatprep.subr.mxu0 0.0
        %1369 = vmatpush1.msra.mxu0 0.0
        %1370 = vmatprep.mubr.f32.mxu0 0.0
        %v1371 = vand.u32 %v242, 4294901760
        %1372 = vmatmul.mubr.f32.gmra.mrb[0].mxu0 %v1371
        %v1373 = vpop.f32.mrb[0].mxu0
        %v1374 = vadd.f32 %v1269, %v1373
        %v1375 = vpop.f32.mrb[0].mxu0
        %v1376 = vadd.f32 %v1271, %v1375
        %1377 = vmatprep.mubr.f32.mxu0 0.0
        %v1378 = vand.u32 %v245, 4294901760
        %1379 = vmatmul.mubr.f32.gmra.mrb[0].mxu0 %v1378
        %v1380 = vpop.f32.mrb[0].mxu0
        %v1381 = vadd.f32 %v1278, %v1380
        %v1382 = vpop.f32.mrb[0].mxu0
        %v1383 = vadd.f32 %v1280, %v1382
        %1384 = vmatprep.mubr.f32.mxu0 0.0
        %v1385 = vand.u32 %v248, 4294901760
        %1386 = vmatmul.mubr.f32.gmra.mrb[0].mxu0 %v1385
        %v1387 = vpop.f32.mrb[0].mxu0
        %v1388 = vadd.f32 %v1287, %v1387
        %v1389 = vpop.f32.mrb[0].mxu0
        %v1390 = vadd.f32 %v1289, %v1389
        %1391 = vmatprep.mubr.f32.mxu0 0.0
        %v1392 = vand.u32 %v251, 4294901760
        %1393 = vmatmul.mubr.f32.gmra.mrb[0].mxu0 %v1392
        %v1394 = vpop.f32.mrb[0].mxu0
        %v1395 = vadd.f32 %v1296, %v1394
        %v1396 = vpop.f32.mrb[0].mxu0
        %v1397 = vadd.f32 %v1298, %v1396
        %1398 = vdwg.mxu0
        %v1399 = vand.u32 %v260, 4294901760
        %1400 = vmatprep.subr.mxu0 %v1399
        %v1401 = vand.u32 %v258, 4294901760
        %1402 = vmatpush1.msra.mxu0 %v1401
        %1403 = vmatprep.subr.mxu0 0.0
        %1404 = vmatpush1.msra.mxu0 0.0
        %1405 = vmatprep.subr.mxu0 0.0
        %1406 = vmatpush1.msra.mxu0 0.0
        %1407 = vmatprep.subr.mxu0 0.0
        %1408 = vmatpush1.msra.mxu0 0.0
        %1409 = vmatprep.subr.mxu0 0.0
        %1410 = vmatpush1.msra.mxu0 0.0
        %1411 = vmatprep.subr.mxu0 0.0
        %1412 = vmatpush1.msra.mxu0 0.0
        %1413 = vmatprep.subr.mxu0 0.0
        %1414 = vmatpush1.msra.mxu0 0.0
        %1415 = vmatprep.subr.mxu0 0.0
        %1416 = vmatpush1.msra.mxu0 0.0
        %1417 = vmatprep.subr.mxu0 0.0
        %1418 = vmatpush1.msra.mxu0 0.0
        %1419 = vmatprep.subr.mxu0 0.0
        %1420 = vmatpush1.msra.mxu0 0.0
        %1421 = vmatprep.subr.mxu0 0.0
        %1422 = vmatpush1.msra.mxu0 0.0
        %1423 = vmatprep.subr.mxu0 0.0
        %1424 = vmatpush1.msra.mxu0 0.0
        %1425 = vmatprep.subr.mxu0 0.0
        %1426 = vmatpush1.msra.mxu0 0.0
        %1427 = vmatprep.subr.mxu0 0.0
        %1428 = vmatpush1.msra.mxu0 0.0
        %1429 = vmatprep.subr.mxu0 0.0
        %1430 = vmatpush1.msra.mxu0 0.0
        %1431 = vmatprep.subr.mxu0 0.0
        %1432 = vmatpush1.msra.mxu0 0.0
        %1433 = vmatprep.subr.mxu0 0.0
        %1434 = vmatpush1.msra.mxu0 0.0
        %1435 = vmatprep.subr.mxu0 0.0
        %1436 = vmatpush1.msra.mxu0 0.0
        %1437 = vmatprep.subr.mxu0 0.0
        %1438 = vmatpush1.msra.mxu0 0.0
        %1439 = vmatprep.subr.mxu0 0.0
        %1440 = vmatpush1.msra.mxu0 0.0
        %1441 = vmatprep.subr.mxu0 0.0
        %1442 = vmatpush1.msra.mxu0 0.0
        %1443 = vmatprep.subr.mxu0 0.0
        %1444 = vmatpush1.msra.mxu0 0.0
        %1445 = vmatprep.subr.mxu0 0.0
        %1446 = vmatpush1.msra.mxu0 0.0
        %1447 = vmatprep.subr.mxu0 0.0
        %1448 = vmatpush1.msra.mxu0 0.0
        %1449 = vmatprep.subr.mxu0 0.0
        %1450 = vmatpush1.msra.mxu0 0.0
        %1451 = vmatprep.subr.mxu0 0.0
        %1452 = vmatpush1.msra.mxu0 0.0
        %1453 = vmatprep.subr.mxu0 0.0
        %1454 = vmatpush1.msra.mxu0 0.0
        %1455 = vmatprep.subr.mxu0 0.0
        %1456 = vmatpush1.msra.mxu0 0.0
        %1457 = vmatprep.subr.mxu0 0.0
        %1458 = vmatpush1.msra.mxu0 0.0
        %1459 = vmatprep.subr.mxu0 0.0
        %1460 = vmatpush1.msra.mxu0 0.0
        %1461 = vmatprep.subr.mxu0 0.0
        %1462 = vmatpush1.msra.mxu0 0.0
        %1463 = vmatprep.subr.mxu0 0.0
        %1464 = vmatpush1.msra.mxu0 0.0
        %1465 = vmatprep.mubr.f32.mxu0 0.0
        %v1466 = vand.u32 %v242, 4294901760
        %1467 = vmatmul.mubr.f32.gmra.mrb[0].mxu0 %v1466
        %v1468 = vpop.f32.mrb[0].mxu0
        %v1469 = vadd.f32 %v1374, %v1468
        %v1470 = vpop.f32.mrb[0].mxu0
        %v1471 = vadd.f32 %v1376, %v1470
        %1472 = vmatprep.mubr.f32.mxu0 0.0
        %v1473 = vand.u32 %v245, 4294901760
        %1474 = vmatmul.mubr.f32.gmra.mrb[0].mxu0 %v1473
        %v1475 = vpop.f32.mrb[0].mxu0
        %v1476 = vadd.f32 %v1381, %v1475
        %v1477 = vpop.f32.mrb[0].mxu0
        %v1478 = vadd.f32 %v1383, %v1477
        %1479 = vmatprep.mubr.f32.mxu0 0.0
        %v1480 = vand.u32 %v248, 4294901760
        %1481 = vmatmul.mubr.f32.gmra.mrb[0].mxu0 %v1480
        %v1482 = vpop.f32.mrb[0].mxu0
        %v1483 = vadd.f32 %v1388, %v1482
        %v1484 = vpop.f32.mrb[0].mxu0
        %v1485 = vadd.f32 %v1390, %v1484
        %1486 = vmatprep.mubr.f32.mxu0 0.0
        %v1487 = vand.u32 %v251, 4294901760
        %1488 = vmatmul.mubr.f32.gmra.mrb[0].mxu0 %v1487
        %v1489 = vpop.f32.mrb[0].mxu0
        %v1490 = vadd.f32 %v1395, %v1489
        %v1491 = vpop.f32.mrb[0].mxu0
        %v1492 = vadd.f32 %v1397, %v1491
        %1493 = vdwg.mxu0
        %v1494 = vand.u32 %v264, 4294901760
        %1495 = vmatprep.subr.mxu0 %v1494
        %v1496 = vand.u32 %v262, 4294901760
        %1497 = vmatpush1.msra.mxu0 %v1496
        %1498 = vmatprep.subr.mxu0 0.0
        %1499 = vmatpush1.msra.mxu0 0.0
        %1500 = vmatprep.subr.mxu0 0.0
        %1501 = vmatpush1.msra.mxu0 0.0
        %1502 = vmatprep.subr.mxu0 0.0
        %1503 = vmatpush1.msra.mxu0 0.0
        %1504 = vmatprep.subr.mxu0 0.0
        %1505 = vmatpush1.msra.mxu0 0.0
        %1506 = vmatprep.subr.mxu0 0.0
        %1507 = vmatpush1.msra.mxu0 0.0
        %1508 = vmatprep.subr.mxu0 0.0
        %1509 = vmatpush1.msra.mxu0 0.0
        %1510 = vmatprep.subr.mxu0 0.0
        %1511 = vmatpush1.msra.mxu0 0.0
        %1512 = vmatprep.subr.mxu0 0.0
        %1513 = vmatpush1.msra.mxu0 0.0
        %1514 = vmatprep.subr.mxu0 0.0
        %1515 = vmatpush1.msra.mxu0 0.0
        %1516 = vmatprep.subr.mxu0 0.0
        %1517 = vmatpush1.msra.mxu0 0.0
        %1518 = vmatprep.subr.mxu0 0.0
        %1519 = vmatpush1.msra.mxu0 0.0
        %1520 = vmatprep.subr.mxu0 0.0
        %1521 = vmatpush1.msra.mxu0 0.0
        %1522 = vmatprep.subr.mxu0 0.0
        %1523 = vmatpush1.msra.mxu0 0.0
        %1524 = vmatprep.subr.mxu0 0.0
        %1525 = vmatpush1.msra.mxu0 0.0
        %1526 = vmatprep.subr.mxu0 0.0
        %1527 = vmatpush1.msra.mxu0 0.0
        %1528 = vmatprep.subr.mxu0 0.0
        %1529 = vmatpush1.msra.mxu0 0.0
        %1530 = vmatprep.subr.mxu0 0.0
        %1531 = vmatpush1.msra.mxu0 0.0
        %1532 = vmatprep.subr.mxu0 0.0
        %1533 = vmatpush1.msra.mxu0 0.0
        %1534 = vmatprep.subr.mxu0 0.0
        %1535 = vmatpush1.msra.mxu0 0.0
        %1536 = vmatprep.subr.mxu0 0.0
        %1537 = vmatpush1.msra.mxu0 0.0
        %1538 = vmatprep.subr.mxu0 0.0
        %1539 = vmatpush1.msra.mxu0 0.0
        %1540 = vmatprep.subr.mxu0 0.0
        %1541 = vmatpush1.msra.mxu0 0.0
        %1542 = vmatprep.subr.mxu0 0.0
        %1543 = vmatpush1.msra.mxu0 0.0
        %1544 = vmatprep.subr.mxu0 0.0
        %1545 = vmatpush1.msra.mxu0 0.0
        %1546 = vmatprep.subr.mxu0 0.0
        %1547 = vmatpush1.msra.mxu0 0.0
        %1548 = vmatprep.subr.mxu0 0.0
        %1549 = vmatpush1.msra.mxu0 0.0
        %1550 = vmatprep.subr.mxu0 0.0
        %1551 = vmatpush1.msra.mxu0 0.0
        %1552 = vmatprep.subr.mxu0 0.0
        %1553 = vmatpush1.msra.mxu0 0.0
        %1554 = vmatprep.subr.mxu0 0.0
        %1555 = vmatpush1.msra.mxu0 0.0
        %1556 = vmatprep.subr.mxu0 0.0
        %1557 = vmatpush1.msra.mxu0 0.0
        %1558 = vmatprep.subr.mxu0 0.0
        %1559 = vmatpush1.msra.mxu0 0.0
        %1560 = vmatprep.mubr.f32.mxu0 0.0
        %v1561 = vand.u32 %v242, 4294901760
        %v1562 = vsub.f32 %v242, %v1561
        %v1563 = vand.u32 %v1562, 4294901760
        %v1564 = vsub.f32 %v1562, %v1563
        %v1565 = vand.u32 %v1564, 4294901760
        %1566 = vmatmul.mubr.f32.gmra.mrb[0].mxu0 %v1565
        %v1567 = vpop.f32.mrb[0].mxu0
        %v1568 = vadd.f32 %v215, %v1567
        %v1569 = vpop.f32.mrb[0].mxu0
        %v1570 = vadd.f32 %v215, %v1569
        %1571 = vmatprep.mubr.f32.mxu0 0.0
        %v1572 = vand.u32 %v245, 4294901760
        %v1573 = vsub.f32 %v245, %v1572
        %v1574 = vand.u32 %v1573, 4294901760
        %v1575 = vsub.f32 %v1573, %v1574
        %v1576 = vand.u32 %v1575, 4294901760
        %1577 = vmatmul.mubr.f32.gmra.mrb[0].mxu0 %v1576
        %v1578 = vpop.f32.mrb[0].mxu0
        %v1579 = vadd.f32 %v220, %v1578
        %v1580 = vpop.f32.mrb[0].mxu0
        %v1581 = vadd.f32 %v220, %v1580
        %1582 = vmatprep.mubr.f32.mxu0 0.0
        %v1583 = vand.u32 %v248, 4294901760
        %v1584 = vsub.f32 %v248, %v1583
        %v1585 = vand.u32 %v1584, 4294901760
        %v1586 = vsub.f32 %v1584, %v1585
        %v1587 = vand.u32 %v1586, 4294901760
        %1588 = vmatmul.mubr.f32.gmra.mrb[0].mxu0 %v1587
        %v1589 = vpop.f32.mrb[0].mxu0
        %v1590 = vadd.f32 %v225, %v1589
        %v1591 = vpop.f32.mrb[0].mxu0
        %v1592 = vadd.f32 %v225, %v1591
        %1593 = vmatprep.mubr.f32.mxu0 0.0
        %v1594 = vand.u32 %v251, 4294901760
        %v1595 = vsub.f32 %v251, %v1594
        %v1596 = vand.u32 %v1595, 4294901760
        %v1597 = vsub.f32 %v1595, %v1596
        %v1598 = vand.u32 %v1597, 4294901760
        %1599 = vmatmul.mubr.f32.gmra.mrb[0].mxu0 %v1598
        %v1600 = vpop.f32.mrb[0].mxu0
        %v1601 = vadd.f32 %v230, %v1600
        %v1602 = vpop.f32.mrb[0].mxu0
        %v1603 = vadd.f32 %v230, %v1602
        %1604 = vdwg.mxu0
        %v1605 = vand.u32 %v264, 4294901760
        %v1606 = vsub.f32 %v264, %v1605
        %v1607 = vand.u32 %v1606, 4294901760
        %v1608 = vsub.f32 %v1606, %v1607
        %v1609 = vand.u32 %v1608, 4294901760
        %1610 = vmatprep.subr.mxu0 %v1609
        %v1611 = vand.u32 %v262, 4294901760
        %v1612 = vsub.f32 %v262, %v1611
        %v1613 = vand.u32 %v1612, 4294901760
        %v1614 = vsub.f32 %v1612, %v1613
        %v1615 = vand.u32 %v1614, 4294901760
        %1616 = vmatpush1.msra.mxu0 %v1615
        %1617 = vmatprep.subr.mxu0 0.0
        %1618 = vmatpush1.msra.mxu0 0.0
        %1619 = vmatprep.subr.mxu0 0.0
        %1620 = vmatpush1.msra.mxu0 0.0
        %1621 = vmatprep.subr.mxu0 0.0
        %1622 = vmatpush1.msra.mxu0 0.0
        %1623 = vmatprep.subr.mxu0 0.0
        %1624 = vmatpush1.msra.mxu0 0.0
        %1625 = vmatprep.subr.mxu0 0.0
        %1626 = vmatpush1.msra.mxu0 0.0
        %1627 = vmatprep.subr.mxu0 0.0
        %1628 = vmatpush1.msra.mxu0 0.0
        %1629 = vmatprep.subr.mxu0 0.0
        %1630 = vmatpush1.msra.mxu0 0.0
        %1631 = vmatprep.subr.mxu0 0.0
        %1632 = vmatpush1.msra.mxu0 0.0
        %1633 = vmatprep.subr.mxu0 0.0
        %1634 = vmatpush1.msra.mxu0 0.0
        %1635 = vmatprep.subr.mxu0 0.0
        %1636 = vmatpush1.msra.mxu0 0.0
        %1637 = vmatprep.subr.mxu0 0.0
        %1638 = vmatpush1.msra.mxu0 0.0
        %1639 = vmatprep.subr.mxu0 0.0
        %1640 = vmatpush1.msra.mxu0 0.0
        %1641 = vmatprep.subr.mxu0 0.0
        %1642 = vmatpush1.msra.mxu0 0.0
        %1643 = vmatprep.subr.mxu0 0.0
        %1644 = vmatpush1.msra.mxu0 0.0
        %1645 = vmatprep.subr.mxu0 0.0
        %1646 = vmatpush1.msra.mxu0 0.0
        %1647 = vmatprep.subr.mxu0 0.0
        %1648 = vmatpush1.msra.mxu0 0.0
        %1649 = vmatprep.subr.mxu0 0.0
        %1650 = vmatpush1.msra.mxu0 0.0
        %1651 = vmatprep.subr.mxu0 0.0
        %1652 = vmatpush1.msra.mxu0 0.0
        %1653 = vmatprep.subr.mxu0 0.0
        %1654 = vmatpush1.msra.mxu0 0.0
        %1655 = vmatprep.subr.mxu0 0.0
        %1656 = vmatpush1.msra.mxu0 0.0
        %1657 = vmatprep.subr.mxu0 0.0
        %1658 = vmatpush1.msra.mxu0 0.0
        %1659 = vmatprep.subr.mxu0 0.0
        %1660 = vmatpush1.msra.mxu0 0.0
        %1661 = vmatprep.subr.mxu0 0.0
        %1662 = vmatpush1.msra.mxu0 0.0
        %1663 = vmatprep.subr.mxu0 0.0
        %1664 = vmatpush1.msra.mxu0 0.0
        %1665 = vmatprep.subr.mxu0 0.0
        %1666 = vmatpush1.msra.mxu0 0.0
        %1667 = vmatprep.subr.mxu0 0.0
        %1668 = vmatpush1.msra.mxu0 0.0
        %1669 = vmatprep.subr.mxu0 0.0
        %1670 = vmatpush1.msra.mxu0 0.0
        %1671 = vmatprep.subr.mxu0 0.0
        %1672 = vmatpush1.msra.mxu0 0.0
        %1673 = vmatprep.subr.mxu0 0.0
        %1674 = vmatpush1.msra.mxu0 0.0
        %1675 = vmatprep.subr.mxu0 0.0
        %1676 = vmatpush1.msra.mxu0 0.0
        %1677 = vmatprep.subr.mxu0 0.0
        %1678 = vmatpush1.msra.mxu0 0.0
        %1679 = vmatprep.mubr.f32.mxu0 0.0
        %v1680 = vand.u32 %v242, 4294901760
        %1681 = vmatmul.mubr.f32.gmra.mrb[0].mxu0 %v1680
        %v1682 = vpop.f32.mrb[0].mxu0
        %v1683 = vadd.f32 %v1568, %v1682
        %v1684 = vpop.f32.mrb[0].mxu0
        %v1685 = vadd.f32 %v1570, %v1684
        %1686 = vmatprep.mubr.f32.mxu0 0.0
        %v1687 = vand.u32 %v245, 4294901760
        %1688 = vmatmul.mubr.f32.gmra.mrb[0].mxu0 %v1687
        %v1689 = vpop.f32.mrb[0].mxu0
        %v1690 = vadd.f32 %v1579, %v1689
        %v1691 = vpop.f32.mrb[0].mxu0
        %v1692 = vadd.f32 %v1581, %v1691
        %1693 = vmatprep.mubr.f32.mxu0 0.0
        %v1694 = vand.u32 %v248, 4294901760
        %1695 = vmatmul.mubr.f32.gmra.mrb[0].mxu0 %v1694
        %v1696 = vpop.f32.mrb[0].mxu0
        %v1697 = vadd.f32 %v1590, %v1696
        %v1698 = vpop.f32.mrb[0].mxu0
        %v1699 = vadd.f32 %v1592, %v1698
        %1700 = vmatprep.mubr.f32.mxu0 0.0
        %v1701 = vand.u32 %v251, 4294901760
        %1702 = vmatmul.mubr.f32.gmra.mrb[0].mxu0 %v1701
        %v1703 = vpop.f32.mrb[0].mxu0
        %v1704 = vadd.f32 %v1601, %v1703
        %v1705 = vpop.f32.mrb[0].mxu0
        %v1706 = vadd.f32 %v1603, %v1705
        %1707 = vdwg.mxu0
        %v1708 = vand.u32 %v264, 4294901760
        %v1709 = vsub.f32 %v264, %v1708
        %1710 = vmatprep.subr.mxu0 %v1709
        %v1711 = vand.u32 %v262, 4294901760
        %v1712 = vsub.f32 %v262, %v1711
        %1713 = vmatpush1.msra.mxu0 %v1712
        %1714 = vmatprep.subr.mxu0 0.0
        %1715 = vmatpush1.msra.mxu0 0.0
        %1716 = vmatprep.subr.mxu0 0.0
        %1717 = vmatpush1.msra.mxu0 0.0
        %1718 = vmatprep.subr.mxu0 0.0
        %1719 = vmatpush1.msra.mxu0 0.0
        %1720 = vmatprep.subr.mxu0 0.0
        %1721 = vmatpush1.msra.mxu0 0.0
        %1722 = vmatprep.subr.mxu0 0.0
        %1723 = vmatpush1.msra.mxu0 0.0
        %1724 = vmatprep.subr.mxu0 0.0
        %1725 = vmatpush1.msra.mxu0 0.0
        %1726 = vmatprep.subr.mxu0 0.0
        %1727 = vmatpush1.msra.mxu0 0.0
        %1728 = vmatprep.subr.mxu0 0.0
        %1729 = vmatpush1.msra.mxu0 0.0
        %1730 = vmatprep.subr.mxu0 0.0
        %1731 = vmatpush1.msra.mxu0 0.0
        %1732 = vmatprep.subr.mxu0 0.0
        %1733 = vmatpush1.msra.mxu0 0.0
        %1734 = vmatprep.subr.mxu0 0.0
        %1735 = vmatpush1.msra.mxu0 0.0
        %1736 = vmatprep.subr.mxu0 0.0
        %1737 = vmatpush1.msra.mxu0 0.0
        %1738 = vmatprep.subr.mxu0 0.0
        %1739 = vmatpush1.msra.mxu0 0.0
        %1740 = vmatprep.subr.mxu0 0.0
        %1741 = vmatpush1.msra.mxu0 0.0
        %1742 = vmatprep.subr.mxu0 0.0
        %1743 = vmatpush1.msra.mxu0 0.0
        %1744 = vmatprep.subr.mxu0 0.0
        %1745 = vmatpush1.msra.mxu0 0.0
        %1746 = vmatprep.subr.mxu0 0.0
        %1747 = vmatpush1.msra.mxu0 0.0
        %1748 = vmatprep.subr.mxu0 0.0
        %1749 = vmatpush1.msra.mxu0 0.0
        %1750 = vmatprep.subr.mxu0 0.0
        %1751 = vmatpush1.msra.mxu0 0.0
        %1752 = vmatprep.subr.mxu0 0.0
        %1753 = vmatpush1.msra.mxu0 0.0
        %1754 = vmatprep.subr.mxu0 0.0
        %1755 = vmatpush1.msra.mxu0 0.0
        %1756 = vmatprep.subr.mxu0 0.0
        %1757 = vmatpush1.msra.mxu0 0.0
        %1758 = vmatprep.subr.mxu0 0.0
        %1759 = vmatpush1.msra.mxu0 0.0
        %1760 = vmatprep.subr.mxu0 0.0
        %1761 = vmatpush1.msra.mxu0 0.0
        %1762 = vmatprep.subr.mxu0 0.0
        %1763 = vmatpush1.msra.mxu0 0.0
        %1764 = vmatprep.subr.mxu0 0.0
        %1765 = vmatpush1.msra.mxu0 0.0
        %1766 = vmatprep.subr.mxu0 0.0
        %1767 = vmatpush1.msra.mxu0 0.0
        %1768 = vmatprep.subr.mxu0 0.0
        %1769 = vmatpush1.msra.mxu0 0.0
        %1770 = vmatprep.subr.mxu0 0.0
        %1771 = vmatpush1.msra.mxu0 0.0
        %1772 = vmatprep.subr.mxu0 0.0
        %1773 = vmatpush1.msra.mxu0 0.0
        %1774 = vmatprep.subr.mxu0 0.0
        %1775 = vmatpush1.msra.mxu0 0.0
        %1776 = vmatprep.mubr.f32.mxu0 0.0
        %v1777 = vand.u32 %v242, 4294901760
        %v1778 = vsub.f32 %v242, %v1777
        %1779 = vmatmul.mubr.f32.gmra.mrb[0].mxu0 %v1778
        %v1780 = vpop.f32.mrb[0].mxu0
        %v1781 = vadd.f32 %v1683, %v1780
        %v1782 = vpop.f32.mrb[0].mxu0
        %v1783 = vadd.f32 %v1685, %v1782
        %1784 = vmatprep.mubr.f32.mxu0 0.0
        %v1785 = vand.u32 %v245, 4294901760
        %v1786 = vsub.f32 %v245, %v1785
        %1787 = vmatmul.mubr.f32.gmra.mrb[0].mxu0 %v1786
        %v1788 = vpop.f32.mrb[0].mxu0
        %v1789 = vadd.f32 %v1690, %v1788
        %v1790 = vpop.f32.mrb[0].mxu0
        %v1791 = vadd.f32 %v1692, %v1790
        %1792 = vmatprep.mubr.f32.mxu0 0.0
        %v1793 = vand.u32 %v248, 4294901760
        %v1794 = vsub.f32 %v248, %v1793
        %1795 = vmatmul.mubr.f32.gmra.mrb[0].mxu0 %v1794
        %v1796 = vpop.f32.mrb[0].mxu0
        %v1797 = vadd.f32 %v1697, %v1796
        %v1798 = vpop.f32.mrb[0].mxu0
        %v1799 = vadd.f32 %v1699, %v1798
        %1800 = vmatprep.mubr.f32.mxu0 0.0
        %v1801 = vand.u32 %v251, 4294901760
        %v1802 = vsub.f32 %v251, %v1801
        %1803 = vmatmul.mubr.f32.gmra.mrb[0].mxu0 %v1802
        %v1804 = vpop.f32.mrb[0].mxu0
        %v1805 = vadd.f32 %v1704, %v1804
        %v1806 = vpop.f32.mrb[0].mxu0
        %v1807 = vadd.f32 %v1706, %v1806
        %1808 = vdwg.mxu0
        %v1809 = vand.u32 %v264, 4294901760
        %1810 = vmatprep.subr.mxu0 %v1809
        %v1811 = vand.u32 %v262, 4294901760
        %1812 = vmatpush1.msra.mxu0 %v1811
        %1813 = vmatprep.subr.mxu0 0.0
        %1814 = vmatpush1.msra.mxu0 0.0
        %1815 = vmatprep.subr.mxu0 0.0
        %1816 = vmatpush1.msra.mxu0 0.0
        %1817 = vmatprep.subr.mxu0 0.0
        %1818 = vmatpush1.msra.mxu0 0.0
        %1819 = vmatprep.subr.mxu0 0.0
        %1820 = vmatpush1.msra.mxu0 0.0
        %1821 = vmatprep.subr.mxu0 0.0
        %1822 = vmatpush1.msra.mxu0 0.0
        %1823 = vmatprep.subr.mxu0 0.0
        %1824 = vmatpush1.msra.mxu0 0.0
        %1825 = vmatprep.subr.mxu0 0.0
        %1826 = vmatpush1.msra.mxu0 0.0
        %1827 = vmatprep.subr.mxu0 0.0
        %1828 = vmatpush1.msra.mxu0 0.0
        %1829 = vmatprep.subr.mxu0 0.0
        %1830 = vmatpush1.msra.mxu0 0.0
        %1831 = vmatprep.subr.mxu0 0.0
        %1832 = vmatpush1.msra.mxu0 0.0
        %1833 = vmatprep.subr.mxu0 0.0
        %1834 = vmatpush1.msra.mxu0 0.0
        %1835 = vmatprep.subr.mxu0 0.0
        %1836 = vmatpush1.msra.mxu0 0.0
        %1837 = vmatprep.subr.mxu0 0.0
        %1838 = vmatpush1.msra.mxu0 0.0
        %1839 = vmatprep.subr.mxu0 0.0
        %1840 = vmatpush1.msra.mxu0 0.0
        %1841 = vmatprep.subr.mxu0 0.0
        %1842 = vmatpush1.msra.mxu0 0.0
        %1843 = vmatprep.subr.mxu0 0.0
        %1844 = vmatpush1.msra.mxu0 0.0
        %1845 = vmatprep.subr.mxu0 0.0
        %1846 = vmatpush1.msra.mxu0 0.0
        %1847 = vmatprep.subr.mxu0 0.0
        %1848 = vmatpush1.msra.mxu0 0.0
        %1849 = vmatprep.subr.mxu0 0.0
        %1850 = vmatpush1.msra.mxu0 0.0
        %1851 = vmatprep.subr.mxu0 0.0
        %1852 = vmatpush1.msra.mxu0 0.0
        %1853 = vmatprep.subr.mxu0 0.0
        %1854 = vmatpush1.msra.mxu0 0.0
        %1855 = vmatprep.subr.mxu0 0.0
        %1856 = vmatpush1.msra.mxu0 0.0
        %1857 = vmatprep.subr.mxu0 0.0
        %1858 = vmatpush1.msra.mxu0 0.0
        %1859 = vmatprep.subr.mxu0 0.0
        %1860 = vmatpush1.msra.mxu0 0.0
        %1861 = vmatprep.subr.mxu0 0.0
        %1862 = vmatpush1.msra.mxu0 0.0
        %1863 = vmatprep.subr.mxu0 0.0
        %1864 = vmatpush1.msra.mxu0 0.0
        %1865 = vmatprep.subr.mxu0 0.0
        %1866 = vmatpush1.msra.mxu0 0.0
        %1867 = vmatprep.subr.mxu0 0.0
        %1868 = vmatpush1.msra.mxu0 0.0
        %1869 = vmatprep.subr.mxu0 0.0
        %1870 = vmatpush1.msra.mxu0 0.0
        %1871 = vmatprep.subr.mxu0 0.0
        %1872 = vmatpush1.msra.mxu0 0.0
        %1873 = vmatprep.subr.mxu0 0.0
        %1874 = vmatpush1.msra.mxu0 0.0
        %1875 = vmatprep.mubr.f32.mxu0 0.0
        %v1876 = vand.u32 %v242, 4294901760
        %v1877 = vsub.f32 %v242, %v1876
        %v1878 = vand.u32 %v1877, 4294901760
        %1879 = vmatmul.mubr.f32.gmra.mrb[0].mxu0 %v1878
        %v1880 = vpop.f32.mrb[0].mxu0
        %v1881 = vadd.f32 %v1781, %v1880
        %v1882 = vpop.f32.mrb[0].mxu0
        %v1883 = vadd.f32 %v1783, %v1882
        %1884 = vmatprep.mubr.f32.mxu0 0.0
        %v1885 = vand.u32 %v245, 4294901760
        %v1886 = vsub.f32 %v245, %v1885
        %v1887 = vand.u32 %v1886, 4294901760
        %1888 = vmatmul.mubr.f32.gmra.mrb[0].mxu0 %v1887
        %v1889 = vpop.f32.mrb[0].mxu0
        %v1890 = vadd.f32 %v1789, %v1889
        %v1891 = vpop.f32.mrb[0].mxu0
        %v1892 = vadd.f32 %v1791, %v1891
        %1893 = vmatprep.mubr.f32.mxu0 0.0
        %v1894 = vand.u32 %v248, 4294901760
        %v1895 = vsub.f32 %v248, %v1894
        %v1896 = vand.u32 %v1895, 4294901760
        %1897 = vmatmul.mubr.f32.gmra.mrb[0].mxu0 %v1896
        %v1898 = vpop.f32.mrb[0].mxu0
        %v1899 = vadd.f32 %v1797, %v1898
        %v1900 = vpop.f32.mrb[0].mxu0
        %v1901 = vadd.f32 %v1799, %v1900
        %1902 = vmatprep.mubr.f32.mxu0 0.0
        %v1903 = vand.u32 %v251, 4294901760
        %v1904 = vsub.f32 %v251, %v1903
        %v1905 = vand.u32 %v1904, 4294901760
        %1906 = vmatmul.mubr.f32.gmra.mrb[0].mxu0 %v1905
        %v1907 = vpop.f32.mrb[0].mxu0
        %v1908 = vadd.f32 %v1805, %v1907
        %v1909 = vpop.f32.mrb[0].mxu0
        %v1910 = vadd.f32 %v1807, %v1909
        %1911 = vdwg.mxu0
        %v1912 = vand.u32 %v264, 4294901760
        %v1913 = vsub.f32 %v264, %v1912
        %v1914 = vand.u32 %v1913, 4294901760
        %1915 = vmatprep.subr.mxu0 %v1914
        %v1916 = vand.u32 %v262, 4294901760
        %v1917 = vsub.f32 %v262, %v1916
        %v1918 = vand.u32 %v1917, 4294901760
        %1919 = vmatpush1.msra.mxu0 %v1918
        %1920 = vmatprep.subr.mxu0 0.0
        %1921 = vmatpush1.msra.mxu0 0.0
        %1922 = vmatprep.subr.mxu0 0.0
        %1923 = vmatpush1.msra.mxu0 0.0
        %1924 = vmatprep.subr.mxu0 0.0
        %1925 = vmatpush1.msra.mxu0 0.0
        %1926 = vmatprep.subr.mxu0 0.0
        %1927 = vmatpush1.msra.mxu0 0.0
        %1928 = vmatprep.subr.mxu0 0.0
        %1929 = vmatpush1.msra.mxu0 0.0
        %1930 = vmatprep.subr.mxu0 0.0
        %1931 = vmatpush1.msra.mxu0 0.0
        %1932 = vmatprep.subr.mxu0 0.0
        %1933 = vmatpush1.msra.mxu0 0.0
        %1934 = vmatprep.subr.mxu0 0.0
        %1935 = vmatpush1.msra.mxu0 0.0
        %1936 = vmatprep.subr.mxu0 0.0
        %1937 = vmatpush1.msra.mxu0 0.0
        %1938 = vmatprep.subr.mxu0 0.0
        %1939 = vmatpush1.msra.mxu0 0.0
        %1940 = vmatprep.subr.mxu0 0.0
        %1941 = vmatpush1.msra.mxu0 0.0
        %1942 = vmatprep.subr.mxu0 0.0
        %1943 = vmatpush1.msra.mxu0 0.0
        %1944 = vmatprep.subr.mxu0 0.0
        %1945 = vmatpush1.msra.mxu0 0.0
        %1946 = vmatprep.subr.mxu0 0.0
        %1947 = vmatpush1.msra.mxu0 0.0
        %1948 = vmatprep.subr.mxu0 0.0
        %1949 = vmatpush1.msra.mxu0 0.0
        %1950 = vmatprep.subr.mxu0 0.0
        %1951 = vmatpush1.msra.mxu0 0.0
        %1952 = vmatprep.subr.mxu0 0.0
        %1953 = vmatpush1.msra.mxu0 0.0
        %1954 = vmatprep.subr.mxu0 0.0
        %1955 = vmatpush1.msra.mxu0 0.0
        %1956 = vmatprep.subr.mxu0 0.0
        %1957 = vmatpush1.msra.mxu0 0.0
        %1958 = vmatprep.subr.mxu0 0.0
        %1959 = vmatpush1.msra.mxu0 0.0
        %1960 = vmatprep.subr.mxu0 0.0
        %1961 = vmatpush1.msra.mxu0 0.0
        %1962 = vmatprep.subr.mxu0 0.0
        %1963 = vmatpush1.msra.mxu0 0.0
        %1964 = vmatprep.subr.mxu0 0.0
        %1965 = vmatpush1.msra.mxu0 0.0
        %1966 = vmatprep.subr.mxu0 0.0
        %1967 = vmatpush1.msra.mxu0 0.0
        %1968 = vmatprep.subr.mxu0 0.0
        %1969 = vmatpush1.msra.mxu0 0.0
        %1970 = vmatprep.subr.mxu0 0.0
        %1971 = vmatpush1.msra.mxu0 0.0
        %1972 = vmatprep.subr.mxu0 0.0
        %1973 = vmatpush1.msra.mxu0 0.0
        %1974 = vmatprep.subr.mxu0 0.0
        %1975 = vmatpush1.msra.mxu0 0.0
        %1976 = vmatprep.subr.mxu0 0.0
        %1977 = vmatpush1.msra.mxu0 0.0
        %1978 = vmatprep.subr.mxu0 0.0
        %1979 = vmatpush1.msra.mxu0 0.0
        %1980 = vmatprep.subr.mxu0 0.0
        %1981 = vmatpush1.msra.mxu0 0.0
        %1982 = vmatprep.mubr.f32.mxu0 0.0
        %v1983 = vand.u32 %v242, 4294901760
        %1984 = vmatmul.mubr.f32.gmra.mrb[0].mxu0 %v1983
        %v1985 = vpop.f32.mrb[0].mxu0
        %v1986 = vadd.f32 %v1881, %v1985
        %v1987 = vpop.f32.mrb[0].mxu0
        %v1988 = vadd.f32 %v1883, %v1987
        %1989 = vmatprep.mubr.f32.mxu0 0.0
        %v1990 = vand.u32 %v245, 4294901760
        %1991 = vmatmul.mubr.f32.gmra.mrb[0].mxu0 %v1990
        %v1992 = vpop.f32.mrb[0].mxu0
        %v1993 = vadd.f32 %v1890, %v1992
        %v1994 = vpop.f32.mrb[0].mxu0
        %v1995 = vadd.f32 %v1892, %v1994
        %1996 = vmatprep.mubr.f32.mxu0 0.0
        %v1997 = vand.u32 %v248, 4294901760
        %1998 = vmatmul.mubr.f32.gmra.mrb[0].mxu0 %v1997
        %v1999 = vpop.f32.mrb[0].mxu0
        %v2000 = vadd.f32 %v1899, %v1999
        %v2001 = vpop.f32.mrb[0].mxu0
        %v2002 = vadd.f32 %v1901, %v2001
        %2003 = vmatprep.mubr.f32.mxu0 0.0
        %v2004 = vand.u32 %v251, 4294901760
        %2005 = vmatmul.mubr.f32.gmra.mrb[0].mxu0 %v2004
        %v2006 = vpop.f32.mrb[0].mxu0
        %v2007 = vadd.f32 %v1908, %v2006
        %v2008 = vpop.f32.mrb[0].mxu0
        %v2009 = vadd.f32 %v1910, %v2008
        %2010 = vdwg.mxu0
        %v2011 = vand.u32 %v264, 4294901760
        %2012 = vmatprep.subr.mxu0 %v2011
        %v2013 = vand.u32 %v262, 4294901760
        %2014 = vmatpush1.msra.mxu0 %v2013
        %2015 = vmatprep.subr.mxu0 0.0
        %2016 = vmatpush1.msra.mxu0 0.0
        %2017 = vmatprep.subr.mxu0 0.0
        %2018 = vmatpush1.msra.mxu0 0.0
        %2019 = vmatprep.subr.mxu0 0.0
        %2020 = vmatpush1.msra.mxu0 0.0
        %2021 = vmatprep.subr.mxu0 0.0
        %2022 = vmatpush1.msra.mxu0 0.0
        %2023 = vmatprep.subr.mxu0 0.0
        %2024 = vmatpush1.msra.mxu0 0.0
        %2025 = vmatprep.subr.mxu0 0.0
        %2026 = vmatpush1.msra.mxu0 0.0
        %2027 = vmatprep.subr.mxu0 0.0
        %2028 = vmatpush1.msra.mxu0 0.0
        %2029 = vmatprep.subr.mxu0 0.0
        %2030 = vmatpush1.msra.mxu0 0.0
        %2031 = vmatprep.subr.mxu0 0.0
        %2032 = vmatpush1.msra.mxu0 0.0
        %2033 = vmatprep.subr.mxu0 0.0
        %2034 = vmatpush1.msra.mxu0 0.0
        %2035 = vmatprep.subr.mxu0 0.0
        %2036 = vmatpush1.msra.mxu0 0.0
        %2037 = vmatprep.subr.mxu0 0.0
        %2038 = vmatpush1.msra.mxu0 0.0
        %2039 = vmatprep.subr.mxu0 0.0
        %2040 = vmatpush1.msra.mxu0 0.0
        %2041 = vmatprep.subr.mxu0 0.0
        %2042 = vmatpush1.msra.mxu0 0.0
        %2043 = vmatprep.subr.mxu0 0.0
        %2044 = vmatpush1.msra.mxu0 0.0
        %2045 = vmatprep.subr.mxu0 0.0
        %2046 = vmatpush1.msra.mxu0 0.0
        %2047 = vmatprep.subr.mxu0 0.0
        %2048 = vmatpush1.msra.mxu0 0.0
        %2049 = vmatprep.subr.mxu0 0.0
        %2050 = vmatpush1.msra.mxu0 0.0
        %2051 = vmatprep.subr.mxu0 0.0
        %2052 = vmatpush1.msra.mxu0 0.0
        %2053 = vmatprep.subr.mxu0 0.0
        %2054 = vmatpush1.msra.mxu0 0.0
        %2055 = vmatprep.subr.mxu0 0.0
        %2056 = vmatpush1.msra.mxu0 0.0
        %2057 = vmatprep.subr.mxu0 0.0
        %2058 = vmatpush1.msra.mxu0 0.0
        %2059 = vmatprep.subr.mxu0 0.0
        %2060 = vmatpush1.msra.mxu0 0.0
        %2061 = vmatprep.subr.mxu0 0.0
        %2062 = vmatpush1.msra.mxu0 0.0
        %2063 = vmatprep.subr.mxu0 0.0
        %2064 = vmatpush1.msra.mxu0 0.0
        %2065 = vmatprep.subr.mxu0 0.0
        %2066 = vmatpush1.msra.mxu0 0.0
        %2067 = vmatprep.subr.mxu0 0.0
        %2068 = vmatpush1.msra.mxu0 0.0
        %2069 = vmatprep.subr.mxu0 0.0
        %2070 = vmatpush1.msra.mxu0 0.0
        %2071 = vmatprep.subr.mxu0 0.0
        %2072 = vmatpush1.msra.mxu0 0.0
        %2073 = vmatprep.subr.mxu0 0.0
        %2074 = vmatpush1.msra.mxu0 0.0
        %2075 = vmatprep.subr.mxu0 0.0
        %2076 = vmatpush1.msra.mxu0 0.0
        %2077 = vmatprep.mubr.f32.mxu0 0.0
        %v2078 = vand.u32 %v242, 4294901760
        %2079 = vmatmul.mubr.f32.gmra.mrb[0].mxu0 %v2078
        %v2080 = vpop.f32.mrb[0].mxu0
        %v2081 = vadd.f32 %v1986, %v2080
        %v2082 = vpop.f32.mrb[0].mxu0
        %v2083 = vadd.f32 %v1988, %v2082
        %2084 = vmatprep.mubr.f32.mxu0 0.0
        %v2085 = vand.u32 %v245, 4294901760
        %2086 = vmatmul.mubr.f32.gmra.mrb[0].mxu0 %v2085
        %v2087 = vpop.f32.mrb[0].mxu0
        %v2088 = vadd.f32 %v1993, %v2087
        %v2089 = vpop.f32.mrb[0].mxu0
        %v2090 = vadd.f32 %v1995, %v2089
        %2091 = vmatprep.mubr.f32.mxu0 0.0
        %v2092 = vand.u32 %v248, 4294901760
        %2093 = vmatmul.mubr.f32.gmra.mrb[0].mxu0 %v2092
        %v2094 = vpop.f32.mrb[0].mxu0
        %v2095 = vadd.f32 %v2000, %v2094
        %v2096 = vpop.f32.mrb[0].mxu0
        %v2097 = vadd.f32 %v2002, %v2096
        %2098 = vmatprep.mubr.f32.mxu0 0.0
        %v2099 = vand.u32 %v251, 4294901760
        %2100 = vmatmul.mubr.f32.gmra.mrb[0].mxu0 %v2099
        %v2101 = vpop.f32.mrb[0].mxu0
        %v2102 = vadd.f32 %v2007, %v2101
        %v2103 = vpop.f32.mrb[0].mxu0
        %v2104 = vadd.f32 %v2009, %v2103
        %2105 = vdwg.mxu0
        %v2106 = vand.u32 %v268, 4294901760
        %2107 = vmatprep.subr.mxu0 %v2106
        %v2108 = vand.u32 %v266, 4294901760
        %2109 = vmatpush1.msra.mxu0 %v2108
        %2110 = vmatprep.subr.mxu0 0.0
        %2111 = vmatpush1.msra.mxu0 0.0
        %2112 = vmatprep.subr.mxu0 0.0
        %2113 = vmatpush1.msra.mxu0 0.0
        %2114 = vmatprep.subr.mxu0 0.0
        %2115 = vmatpush1.msra.mxu0 0.0
        %2116 = vmatprep.subr.mxu0 0.0
        %2117 = vmatpush1.msra.mxu0 0.0
        %2118 = vmatprep.subr.mxu0 0.0
        %2119 = vmatpush1.msra.mxu0 0.0
        %2120 = vmatprep.subr.mxu0 0.0
        %2121 = vmatpush1.msra.mxu0 0.0
        %2122 = vmatprep.subr.mxu0 0.0
        %2123 = vmatpush1.msra.mxu0 0.0
        %2124 = vmatprep.subr.mxu0 0.0
        %2125 = vmatpush1.msra.mxu0 0.0
        %2126 = vmatprep.subr.mxu0 0.0
        %2127 = vmatpush1.msra.mxu0 0.0
        %2128 = vmatprep.subr.mxu0 0.0
        %2129 = vmatpush1.msra.mxu0 0.0
        %2130 = vmatprep.subr.mxu0 0.0
        %2131 = vmatpush1.msra.mxu0 0.0
        %2132 = vmatprep.subr.mxu0 0.0
        %2133 = vmatpush1.msra.mxu0 0.0
        %2134 = vmatprep.subr.mxu0 0.0
        %2135 = vmatpush1.msra.mxu0 0.0
        %2136 = vmatprep.subr.mxu0 0.0
        %2137 = vmatpush1.msra.mxu0 0.0
        %2138 = vmatprep.subr.mxu0 0.0
        %2139 = vmatpush1.msra.mxu0 0.0
        %2140 = vmatprep.subr.mxu0 0.0
        %2141 = vmatpush1.msra.mxu0 0.0
        %2142 = vmatprep.subr.mxu0 0.0
        %2143 = vmatpush1.msra.mxu0 0.0
        %2144 = vmatprep.subr.mxu0 0.0
        %2145 = vmatpush1.msra.mxu0 0.0
        %2146 = vmatprep.subr.mxu0 0.0
        %2147 = vmatpush1.msra.mxu0 0.0
        %2148 = vmatprep.subr.mxu0 0.0
        %2149 = vmatpush1.msra.mxu0 0.0
        %2150 = vmatprep.subr.mxu0 0.0
        %2151 = vmatpush1.msra.mxu0 0.0
        %2152 = vmatprep.subr.mxu0 0.0
        %2153 = vmatpush1.msra.mxu0 0.0
        %2154 = vmatprep.subr.mxu0 0.0
        %2155 = vmatpush1.msra.mxu0 0.0
        %2156 = vmatprep.subr.mxu0 0.0
        %2157 = vmatpush1.msra.mxu0 0.0
        %2158 = vmatprep.subr.mxu0 0.0
        %2159 = vmatpush1.msra.mxu0 0.0
        %2160 = vmatprep.subr.mxu0 0.0
        %2161 = vmatpush1.msra.mxu0 0.0
        %2162 = vmatprep.subr.mxu0 0.0
        %2163 = vmatpush1.msra.mxu0 0.0
        %2164 = vmatprep.subr.mxu0 0.0
        %2165 = vmatpush1.msra.mxu0 0.0
        %2166 = vmatprep.subr.mxu0 0.0
        %2167 = vmatpush1.msra.mxu0 0.0
        %2168 = vmatprep.subr.mxu0 0.0
        %2169 = vmatpush1.msra.mxu0 0.0
        %2170 = vmatprep.subr.mxu0 0.0
        %2171 = vmatpush1.msra.mxu0 0.0
        %2172 = vmatprep.mubr.f32.mxu0 0.0
        %v2173 = vand.u32 %v242, 4294901760
        %v2174 = vsub.f32 %v242, %v2173
        %v2175 = vand.u32 %v2174, 4294901760
        %v2176 = vsub.f32 %v2174, %v2175
        %v2177 = vand.u32 %v2176, 4294901760
        %2178 = vmatmul.mubr.f32.gmra.mrb[0].mxu0 %v2177
        %v2179 = vpop.f32.mrb[0].mxu0
        %v2180 = vadd.f32 %v215, %v2179
        %v2181 = vpop.f32.mrb[0].mxu0
        %v2182 = vadd.f32 %v215, %v2181
        %2183 = vmatprep.mubr.f32.mxu0 0.0
        %v2184 = vand.u32 %v245, 4294901760
        %v2185 = vsub.f32 %v245, %v2184
        %v2186 = vand.u32 %v2185, 4294901760
        %v2187 = vsub.f32 %v2185, %v2186
        %v2188 = vand.u32 %v2187, 4294901760
        %2189 = vmatmul.mubr.f32.gmra.mrb[0].mxu0 %v2188
        %v2190 = vpop.f32.mrb[0].mxu0
        %v2191 = vadd.f32 %v220, %v2190
        %v2192 = vpop.f32.mrb[0].mxu0
        %v2193 = vadd.f32 %v220, %v2192
        %2194 = vmatprep.mubr.f32.mxu0 0.0
        %v2195 = vand.u32 %v248, 4294901760
        %v2196 = vsub.f32 %v248, %v2195
        %v2197 = vand.u32 %v2196, 4294901760
        %v2198 = vsub.f32 %v2196, %v2197
        %v2199 = vand.u32 %v2198, 4294901760
        %2200 = vmatmul.mubr.f32.gmra.mrb[0].mxu0 %v2199
        %v2201 = vpop.f32.mrb[0].mxu0
        %v2202 = vadd.f32 %v225, %v2201
        %v2203 = vpop.f32.mrb[0].mxu0
        %v2204 = vadd.f32 %v225, %v2203
        %2205 = vmatprep.mubr.f32.mxu0 0.0
        %v2206 = vand.u32 %v251, 4294901760
        %v2207 = vsub.f32 %v251, %v2206
        %v2208 = vand.u32 %v2207, 4294901760
        %v2209 = vsub.f32 %v2207, %v2208
        %v2210 = vand.u32 %v2209, 4294901760
        %2211 = vmatmul.mubr.f32.gmra.mrb[0].mxu0 %v2210
        %v2212 = vpop.f32.mrb[0].mxu0
        %v2213 = vadd.f32 %v230, %v2212
        %v2214 = vpop.f32.mrb[0].mxu0
        %v2215 = vadd.f32 %v230, %v2214
        %2216 = vdwg.mxu0
        %v2217 = vand.u32 %v268, 4294901760
        %v2218 = vsub.f32 %v268, %v2217
        %v2219 = vand.u32 %v2218, 4294901760
        %v2220 = vsub.f32 %v2218, %v2219
        %v2221 = vand.u32 %v2220, 4294901760
        %2222 = vmatprep.subr.mxu0 %v2221
        %v2223 = vand.u32 %v266, 4294901760
        %v2224 = vsub.f32 %v266, %v2223
        %v2225 = vand.u32 %v2224, 4294901760
        %v2226 = vsub.f32 %v2224, %v2225
        %v2227 = vand.u32 %v2226, 4294901760
        %2228 = vmatpush1.msra.mxu0 %v2227
        %2229 = vmatprep.subr.mxu0 0.0
        %2230 = vmatpush1.msra.mxu0 0.0
        %2231 = vmatprep.subr.mxu0 0.0
        %2232 = vmatpush1.msra.mxu0 0.0
        %2233 = vmatprep.subr.mxu0 0.0
        %2234 = vmatpush1.msra.mxu0 0.0
        %2235 = vmatprep.subr.mxu0 0.0
        %2236 = vmatpush1.msra.mxu0 0.0
        %2237 = vmatprep.subr.mxu0 0.0
        %2238 = vmatpush1.msra.mxu0 0.0
        %2239 = vmatprep.subr.mxu0 0.0
        %2240 = vmatpush1.msra.mxu0 0.0
        %2241 = vmatprep.subr.mxu0 0.0
        %2242 = vmatpush1.msra.mxu0 0.0
        %2243 = vmatprep.subr.mxu0 0.0
        %2244 = vmatpush1.msra.mxu0 0.0
        %2245 = vmatprep.subr.mxu0 0.0
        %2246 = vmatpush1.msra.mxu0 0.0
        %2247 = vmatprep.subr.mxu0 0.0
        %2248 = vmatpush1.msra.mxu0 0.0
        %2249 = vmatprep.subr.mxu0 0.0
        %2250 = vmatpush1.msra.mxu0 0.0
        %2251 = vmatprep.subr.mxu0 0.0
        %2252 = vmatpush1.msra.mxu0 0.0
        %2253 = vmatprep.subr.mxu0 0.0
        %2254 = vmatpush1.msra.mxu0 0.0
        %2255 = vmatprep.subr.mxu0 0.0
        %2256 = vmatpush1.msra.mxu0 0.0
        %2257 = vmatprep.subr.mxu0 0.0
        %2258 = vmatpush1.msra.mxu0 0.0
        %2259 = vmatprep.subr.mxu0 0.0
        %2260 = vmatpush1.msra.mxu0 0.0
        %2261 = vmatprep.subr.mxu0 0.0
        %2262 = vmatpush1.msra.mxu0 0.0
        %2263 = vmatprep.subr.mxu0 0.0
        %2264 = vmatpush1.msra.mxu0 0.0
        %2265 = vmatprep.subr.mxu0 0.0
        %2266 = vmatpush1.msra.mxu0 0.0
        %2267 = vmatprep.subr.mxu0 0.0
        %2268 = vmatpush1.msra.mxu0 0.0
        %2269 = vmatprep.subr.mxu0 0.0
        %2270 = vmatpush1.msra.mxu0 0.0
        %2271 = vmatprep.subr.mxu0 0.0
        %2272 = vmatpush1.msra.mxu0 0.0
        %2273 = vmatprep.subr.mxu0 0.0
        %2274 = vmatpush1.msra.mxu0 0.0
        %2275 = vmatprep.subr.mxu0 0.0
        %2276 = vmatpush1.msra.mxu0 0.0
        %2277 = vmatprep.subr.mxu0 0.0
        %2278 = vmatpush1.msra.mxu0 0.0
        %2279 = vmatprep.subr.mxu0 0.0
        %2280 = vmatpush1.msra.mxu0 0.0
        %2281 = vmatprep.subr.mxu0 0.0
        %2282 = vmatpush1.msra.mxu0 0.0
        %2283 = vmatprep.subr.mxu0 0.0
        %2284 = vmatpush1.msra.mxu0 0.0
        %2285 = vmatprep.subr.mxu0 0.0
        %2286 = vmatpush1.msra.mxu0 0.0
        %2287 = vmatprep.subr.mxu0 0.0
        %2288 = vmatpush1.msra.mxu0 0.0
        %2289 = vmatprep.subr.mxu0 0.0
        %2290 = vmatpush1.msra.mxu0 0.0
        %2291 = vmatprep.mubr.f32.mxu0 0.0
        %v2292 = vand.u32 %v242, 4294901760
        %2293 = vmatmul.mubr.f32.gmra.mrb[0].mxu0 %v2292
        %v2294 = vpop.f32.mrb[0].mxu0
        %v2295 = vadd.f32 %v2180, %v2294
        %v2296 = vpop.f32.mrb[0].mxu0
        %v2297 = vadd.f32 %v2182, %v2296
        %2298 = vmatprep.mubr.f32.mxu0 0.0
        %v2299 = vand.u32 %v245, 4294901760
        %2300 = vmatmul.mubr.f32.gmra.mrb[0].mxu0 %v2299
        %v2301 = vpop.f32.mrb[0].mxu0
        %v2302 = vadd.f32 %v2191, %v2301
        %v2303 = vpop.f32.mrb[0].mxu0
        %v2304 = vadd.f32 %v2193, %v2303
        %2305 = vmatprep.mubr.f32.mxu0 0.0
        %v2306 = vand.u32 %v248, 4294901760
        %2307 = vmatmul.mubr.f32.gmra.mrb[0].mxu0 %v2306
        %v2308 = vpop.f32.mrb[0].mxu0
        %v2309 = vadd.f32 %v2202, %v2308
        %v2310 = vpop.f32.mrb[0].mxu0
        %v2311 = vadd.f32 %v2204, %v2310
        %2312 = vmatprep.mubr.f32.mxu0 0.0
        %v2313 = vand.u32 %v251, 4294901760
        %2314 = vmatmul.mubr.f32.gmra.mrb[0].mxu0 %v2313
        %v2315 = vpop.f32.mrb[0].mxu0
        %v2316 = vadd.f32 %v2213, %v2315
        %v2317 = vpop.f32.mrb[0].mxu0
        %v2318 = vadd.f32 %v2215, %v2317
        %2319 = vdwg.mxu0
        %v2320 = vand.u32 %v268, 4294901760
        %v2321 = vsub.f32 %v268, %v2320
        %2322 = vmatprep.subr.mxu0 %v2321
        %v2323 = vand.u32 %v266, 4294901760
        %v2324 = vsub.f32 %v266, %v2323
        %2325 = vmatpush1.msra.mxu0 %v2324
        %2326 = vmatprep.subr.mxu0 0.0
        %2327 = vmatpush1.msra.mxu0 0.0
        %2328 = vmatprep.subr.mxu0 0.0
        %2329 = vmatpush1.msra.mxu0 0.0
        %2330 = vmatprep.subr.mxu0 0.0
        %2331 = vmatpush1.msra.mxu0 0.0
        %2332 = vmatprep.subr.mxu0 0.0
        %2333 = vmatpush1.msra.mxu0 0.0
        %2334 = vmatprep.subr.mxu0 0.0
        %2335 = vmatpush1.msra.mxu0 0.0
        %2336 = vmatprep.subr.mxu0 0.0
        %2337 = vmatpush1.msra.mxu0 0.0
        %2338 = vmatprep.subr.mxu0 0.0
        %2339 = vmatpush1.msra.mxu0 0.0
        %2340 = vmatprep.subr.mxu0 0.0
        %2341 = vmatpush1.msra.mxu0 0.0
        %2342 = vmatprep.subr.mxu0 0.0
        %2343 = vmatpush1.msra.mxu0 0.0
        %2344 = vmatprep.subr.mxu0 0.0
        %2345 = vmatpush1.msra.mxu0 0.0
        %2346 = vmatprep.subr.mxu0 0.0
        %2347 = vmatpush1.msra.mxu0 0.0
        %2348 = vmatprep.subr.mxu0 0.0
        %2349 = vmatpush1.msra.mxu0 0.0
        %2350 = vmatprep.subr.mxu0 0.0
        %2351 = vmatpush1.msra.mxu0 0.0
        %2352 = vmatprep.subr.mxu0 0.0
        %2353 = vmatpush1.msra.mxu0 0.0
        %2354 = vmatprep.subr.mxu0 0.0
        %2355 = vmatpush1.msra.mxu0 0.0
        %2356 = vmatprep.subr.mxu0 0.0
        %2357 = vmatpush1.msra.mxu0 0.0
        %2358 = vmatprep.subr.mxu0 0.0
        %2359 = vmatpush1.msra.mxu0 0.0
        %2360 = vmatprep.subr.mxu0 0.0
        %2361 = vmatpush1.msra.mxu0 0.0
        %2362 = vmatprep.subr.mxu0 0.0
        %2363 = vmatpush1.msra.mxu0 0.0
        %2364 = vmatprep.subr.mxu0 0.0
        %2365 = vmatpush1.msra.mxu0 0.0
        %2366 = vmatprep.subr.mxu0 0.0
        %2367 = vmatpush1.msra.mxu0 0.0
        %2368 = vmatprep.subr.mxu0 0.0
        %2369 = vmatpush1.msra.mxu0 0.0
        %2370 = vmatprep.subr.mxu0 0.0
        %2371 = vmatpush1.msra.mxu0 0.0
        %2372 = vmatprep.subr.mxu0 0.0
        %2373 = vmatpush1.msra.mxu0 0.0
        %2374 = vmatprep.subr.mxu0 0.0
        %2375 = vmatpush1.msra.mxu0 0.0
        %2376 = vmatprep.subr.mxu0 0.0
        %2377 = vmatpush1.msra.mxu0 0.0
        %2378 = vmatprep.subr.mxu0 0.0
        %2379 = vmatpush1.msra.mxu0 0.0
        %2380 = vmatprep.subr.mxu0 0.0
        %2381 = vmatpush1.msra.mxu0 0.0
        %2382 = vmatprep.subr.mxu0 0.0
        %2383 = vmatpush1.msra.mxu0 0.0
        %2384 = vmatprep.subr.mxu0 0.0
        %2385 = vmatpush1.msra.mxu0 0.0
        %2386 = vmatprep.subr.mxu0 0.0
        %2387 = vmatpush1.msra.mxu0 0.0
        %2388 = vmatprep.mubr.f32.mxu0 0.0
        %v2389 = vand.u32 %v242, 4294901760
        %v2390 = vsub.f32 %v242, %v2389
        %2391 = vmatmul.mubr.f32.gmra.mrb[0].mxu0 %v2390
        %v2392 = vpop.f32.mrb[0].mxu0
        %v2393 = vadd.f32 %v2295, %v2392
        %v2394 = vpop.f32.mrb[0].mxu0
        %v2395 = vadd.f32 %v2297, %v2394
        %2396 = vmatprep.mubr.f32.mxu0 0.0
        %v2397 = vand.u32 %v245, 4294901760
        %v2398 = vsub.f32 %v245, %v2397
        %2399 = vmatmul.mubr.f32.gmra.mrb[0].mxu0 %v2398
        %v2400 = vpop.f32.mrb[0].mxu0
        %v2401 = vadd.f32 %v2302, %v2400
        %v2402 = vpop.f32.mrb[0].mxu0
        %v2403 = vadd.f32 %v2304, %v2402
        %2404 = vmatprep.mubr.f32.mxu0 0.0
        %v2405 = vand.u32 %v248, 4294901760
        %v2406 = vsub.f32 %v248, %v2405
        %2407 = vmatmul.mubr.f32.gmra.mrb[0].mxu0 %v2406
        %v2408 = vpop.f32.mrb[0].mxu0
        %v2409 = vadd.f32 %v2309, %v2408
        %v2410 = vpop.f32.mrb[0].mxu0
        %v2411 = vadd.f32 %v2311, %v2410
        %2412 = vmatprep.mubr.f32.mxu0 0.0
        %v2413 = vand.u32 %v251, 4294901760
        %v2414 = vsub.f32 %v251, %v2413
        %2415 = vmatmul.mubr.f32.gmra.mrb[0].mxu0 %v2414
        %v2416 = vpop.f32.mrb[0].mxu0
        %v2417 = vadd.f32 %v2316, %v2416
        %v2418 = vpop.f32.mrb[0].mxu0
        %v2419 = vadd.f32 %v2318, %v2418
        %2420 = vdwg.mxu0
        %v2421 = vand.u32 %v268, 4294901760
        %2422 = vmatprep.subr.mxu0 %v2421
        %v2423 = vand.u32 %v266, 4294901760
        %2424 = vmatpush1.msra.mxu0 %v2423
        %2425 = vmatprep.subr.mxu0 0.0
        %2426 = vmatpush1.msra.mxu0 0.0
        %2427 = vmatprep.subr.mxu0 0.0
        %2428 = vmatpush1.msra.mxu0 0.0
        %2429 = vmatprep.subr.mxu0 0.0
        %2430 = vmatpush1.msra.mxu0 0.0
        %2431 = vmatprep.subr.mxu0 0.0
        %2432 = vmatpush1.msra.mxu0 0.0
        %2433 = vmatprep.subr.mxu0 0.0
        %2434 = vmatpush1.msra.mxu0 0.0
        %2435 = vmatprep.subr.mxu0 0.0
        %2436 = vmatpush1.msra.mxu0 0.0
        %2437 = vmatprep.subr.mxu0 0.0
        %2438 = vmatpush1.msra.mxu0 0.0
        %2439 = vmatprep.subr.mxu0 0.0
        %2440 = vmatpush1.msra.mxu0 0.0
        %2441 = vmatprep.subr.mxu0 0.0
        %2442 = vmatpush1.msra.mxu0 0.0
        %2443 = vmatprep.subr.mxu0 0.0
        %2444 = vmatpush1.msra.mxu0 0.0
        %2445 = vmatprep.subr.mxu0 0.0
        %2446 = vmatpush1.msra.mxu0 0.0
        %2447 = vmatprep.subr.mxu0 0.0
        %2448 = vmatpush1.msra.mxu0 0.0
        %2449 = vmatprep.subr.mxu0 0.0
        %2450 = vmatpush1.msra.mxu0 0.0
        %2451 = vmatprep.subr.mxu0 0.0
        %2452 = vmatpush1.msra.mxu0 0.0
        %2453 = vmatprep.subr.mxu0 0.0
        %2454 = vmatpush1.msra.mxu0 0.0
        %2455 = vmatprep.subr.mxu0 0.0
        %2456 = vmatpush1.msra.mxu0 0.0
        %2457 = vmatprep.subr.mxu0 0.0
        %2458 = vmatpush1.msra.mxu0 0.0
        %2459 = vmatprep.subr.mxu0 0.0
        %2460 = vmatpush1.msra.mxu0 0.0
        %2461 = vmatprep.subr.mxu0 0.0
        %2462 = vmatpush1.msra.mxu0 0.0
        %2463 = vmatprep.subr.mxu0 0.0
        %2464 = vmatpush1.msra.mxu0 0.0
        %2465 = vmatprep.subr.mxu0 0.0
        %2466 = vmatpush1.msra.mxu0 0.0
        %2467 = vmatprep.subr.mxu0 0.0
        %2468 = vmatpush1.msra.mxu0 0.0
        %2469 = vmatprep.subr.mxu0 0.0
        %2470 = vmatpush1.msra.mxu0 0.0
        %2471 = vmatprep.subr.mxu0 0.0
        %2472 = vmatpush1.msra.mxu0 0.0
        %2473 = vmatprep.subr.mxu0 0.0
        %2474 = vmatpush1.msra.mxu0 0.0
        %2475 = vmatprep.subr.mxu0 0.0
        %2476 = vmatpush1.msra.mxu0 0.0
        %2477 = vmatprep.subr.mxu0 0.0
        %2478 = vmatpush1.msra.mxu0 0.0
        %2479 = vmatprep.subr.mxu0 0.0
        %2480 = vmatpush1.msra.mxu0 0.0
        %2481 = vmatprep.subr.mxu0 0.0
        %2482 = vmatpush1.msra.mxu0 0.0
        %2483 = vmatprep.subr.mxu0 0.0
        %2484 = vmatpush1.msra.mxu0 0.0
        %2485 = vmatprep.subr.mxu0 0.0
        %2486 = vmatpush1.msra.mxu0 0.0
        %2487 = vmatprep.mubr.f32.mxu0 0.0
        %v2488 = vand.u32 %v242, 4294901760
        %v2489 = vsub.f32 %v242, %v2488
        %v2490 = vand.u32 %v2489, 4294901760
        %2491 = vmatmul.mubr.f32.gmra.mrb[0].mxu0 %v2490
        %v2492 = vpop.f32.mrb[0].mxu0
        %v2493 = vadd.f32 %v2393, %v2492
        %v2494 = vpop.f32.mrb[0].mxu0
        %v2495 = vadd.f32 %v2395, %v2494
        %2496 = vmatprep.mubr.f32.mxu0 0.0
        %v2497 = vand.u32 %v245, 4294901760
        %v2498 = vsub.f32 %v245, %v2497
        %v2499 = vand.u32 %v2498, 4294901760
        %2500 = vmatmul.mubr.f32.gmra.mrb[0].mxu0 %v2499
        %v2501 = vpop.f32.mrb[0].mxu0
        %v2502 = vadd.f32 %v2401, %v2501
        %v2503 = vpop.f32.mrb[0].mxu0
        %v2504 = vadd.f32 %v2403, %v2503
        %2505 = vmatprep.mubr.f32.mxu0 0.0
        %v2506 = vand.u32 %v248, 4294901760
        %v2507 = vsub.f32 %v248, %v2506
        %v2508 = vand.u32 %v2507, 4294901760
        %2509 = vmatmul.mubr.f32.gmra.mrb[0].mxu0 %v2508
        %v2510 = vpop.f32.mrb[0].mxu0
        %v2511 = vadd.f32 %v2409, %v2510
        %v2512 = vpop.f32.mrb[0].mxu0
        %v2513 = vadd.f32 %v2411, %v2512
        %2514 = vmatprep.mubr.f32.mxu0 0.0
        %v2515 = vand.u32 %v251, 4294901760
        %v2516 = vsub.f32 %v251, %v2515
        %v2517 = vand.u32 %v2516, 4294901760
        %2518 = vmatmul.mubr.f32.gmra.mrb[0].mxu0 %v2517
        %v2519 = vpop.f32.mrb[0].mxu0
        %v2520 = vadd.f32 %v2417, %v2519
        %v2521 = vpop.f32.mrb[0].mxu0
        %v2522 = vadd.f32 %v2419, %v2521
        %2523 = vdwg.mxu0
        %v2524 = vand.u32 %v268, 4294901760
        %v2525 = vsub.f32 %v268, %v2524
        %v2526 = vand.u32 %v2525, 4294901760
        %2527 = vmatprep.subr.mxu0 %v2526
        %v2528 = vand.u32 %v266, 4294901760
        %v2529 = vsub.f32 %v266, %v2528
        %v2530 = vand.u32 %v2529, 4294901760
        %2531 = vmatpush1.msra.mxu0 %v2530
        %2532 = vmatprep.subr.mxu0 0.0
        %2533 = vmatpush1.msra.mxu0 0.0
        %2534 = vmatprep.subr.mxu0 0.0
        %2535 = vmatpush1.msra.mxu0 0.0
        %2536 = vmatprep.subr.mxu0 0.0
        %2537 = vmatpush1.msra.mxu0 0.0
        %2538 = vmatprep.subr.mxu0 0.0
        %2539 = vmatpush1.msra.mxu0 0.0
        %2540 = vmatprep.subr.mxu0 0.0
        %2541 = vmatpush1.msra.mxu0 0.0
        %2542 = vmatprep.subr.mxu0 0.0
        %2543 = vmatpush1.msra.mxu0 0.0
        %2544 = vmatprep.subr.mxu0 0.0
        %2545 = vmatpush1.msra.mxu0 0.0
        %2546 = vmatprep.subr.mxu0 0.0
        %2547 = vmatpush1.msra.mxu0 0.0
        %2548 = vmatprep.subr.mxu0 0.0
        %2549 = vmatpush1.msra.mxu0 0.0
        %2550 = vmatprep.subr.mxu0 0.0
        %2551 = vmatpush1.msra.mxu0 0.0
        %2552 = vmatprep.subr.mxu0 0.0
        %2553 = vmatpush1.msra.mxu0 0.0
        %2554 = vmatprep.subr.mxu0 0.0
        %2555 = vmatpush1.msra.mxu0 0.0
        %2556 = vmatprep.subr.mxu0 0.0
        %2557 = vmatpush1.msra.mxu0 0.0
        %2558 = vmatprep.subr.mxu0 0.0
        %2559 = vmatpush1.msra.mxu0 0.0
        %2560 = vmatprep.subr.mxu0 0.0
        %2561 = vmatpush1.msra.mxu0 0.0
        %2562 = vmatprep.subr.mxu0 0.0
        %2563 = vmatpush1.msra.mxu0 0.0
        %2564 = vmatprep.subr.mxu0 0.0
        %2565 = vmatpush1.msra.mxu0 0.0
        %2566 = vmatprep.subr.mxu0 0.0
        %2567 = vmatpush1.msra.mxu0 0.0
        %2568 = vmatprep.subr.mxu0 0.0
        %2569 = vmatpush1.msra.mxu0 0.0
        %2570 = vmatprep.subr.mxu0 0.0
        %2571 = vmatpush1.msra.mxu0 0.0
        %2572 = vmatprep.subr.mxu0 0.0
        %2573 = vmatpush1.msra.mxu0 0.0
        %2574 = vmatprep.subr.mxu0 0.0
        %2575 = vmatpush1.msra.mxu0 0.0
        %2576 = vmatprep.subr.mxu0 0.0
        %2577 = vmatpush1.msra.mxu0 0.0
        %2578 = vmatprep.subr.mxu0 0.0
        %2579 = vmatpush1.msra.mxu0 0.0
        %2580 = vmatprep.subr.mxu0 0.0
        %2581 = vmatpush1.msra.mxu0 0.0
        %2582 = vmatprep.subr.mxu0 0.0
        %2583 = vmatpush1.msra.mxu0 0.0
        %2584 = vmatprep.subr.mxu0 0.0
        %2585 = vmatpush1.msra.mxu0 0.0
        %2586 = vmatprep.subr.mxu0 0.0
        %2587 = vmatpush1.msra.mxu0 0.0
        %2588 = vmatprep.subr.mxu0 0.0
        %2589 = vmatpush1.msra.mxu0 0.0
        %2590 = vmatprep.subr.mxu0 0.0
        %2591 = vmatpush1.msra.mxu0 0.0
        %2592 = vmatprep.subr.mxu0 0.0
        %2593 = vmatpush1.msra.mxu0 0.0
        %2594 = vmatprep.mubr.f32.mxu0 0.0
        %v2595 = vand.u32 %v242, 4294901760
        %2596 = vmatmul.mubr.f32.gmra.mrb[0].mxu0 %v2595
        %v2597 = vpop.f32.mrb[0].mxu0
        %v2598 = vadd.f32 %v2493, %v2597
        %v2599 = vpop.f32.mrb[0].mxu0
        %v2600 = vadd.f32 %v2495, %v2599
        %2601 = vmatprep.mubr.f32.mxu0 0.0
        %v2602 = vand.u32 %v245, 4294901760
        %2603 = vmatmul.mubr.f32.gmra.mrb[0].mxu0 %v2602
        %v2604 = vpop.f32.mrb[0].mxu0
        %v2605 = vadd.f32 %v2502, %v2604
        %v2606 = vpop.f32.mrb[0].mxu0
        %v2607 = vadd.f32 %v2504, %v2606
        %2608 = vmatprep.mubr.f32.mxu0 0.0
        %v2609 = vand.u32 %v248, 4294901760
        %2610 = vmatmul.mubr.f32.gmra.mrb[0].mxu0 %v2609
        %v2611 = vpop.f32.mrb[0].mxu0
        %v2612 = vadd.f32 %v2511, %v2611
        %v2613 = vpop.f32.mrb[0].mxu0
        %v2614 = vadd.f32 %v2513, %v2613
        %2615 = vmatprep.mubr.f32.mxu0 0.0
        %v2616 = vand.u32 %v251, 4294901760
        %2617 = vmatmul.mubr.f32.gmra.mrb[0].mxu0 %v2616
        %v2618 = vpop.f32.mrb[0].mxu0
        %v2619 = vadd.f32 %v2520, %v2618
        %v2620 = vpop.f32.mrb[0].mxu0
        %v2621 = vadd.f32 %v2522, %v2620
        %2622 = vdwg.mxu0
        %v2623 = vand.u32 %v268, 4294901760
        %2624 = vmatprep.subr.mxu0 %v2623
        %v2625 = vand.u32 %v266, 4294901760
        %2626 = vmatpush1.msra.mxu0 %v2625
        %2627 = vmatprep.subr.mxu0 0.0
        %2628 = vmatpush1.msra.mxu0 0.0
        %2629 = vmatprep.subr.mxu0 0.0
        %2630 = vmatpush1.msra.mxu0 0.0
        %2631 = vmatprep.subr.mxu0 0.0
        %2632 = vmatpush1.msra.mxu0 0.0
        %2633 = vmatprep.subr.mxu0 0.0
        %2634 = vmatpush1.msra.mxu0 0.0
        %2635 = vmatprep.subr.mxu0 0.0
        %2636 = vmatpush1.msra.mxu0 0.0
        %2637 = vmatprep.subr.mxu0 0.0
        %2638 = vmatpush1.msra.mxu0 0.0
        %2639 = vmatprep.subr.mxu0 0.0
        %2640 = vmatpush1.msra.mxu0 0.0
        %2641 = vmatprep.subr.mxu0 0.0
        %2642 = vmatpush1.msra.mxu0 0.0
        %2643 = vmatprep.subr.mxu0 0.0
        %2644 = vmatpush1.msra.mxu0 0.0
        %2645 = vmatprep.subr.mxu0 0.0
        %2646 = vmatpush1.msra.mxu0 0.0
        %2647 = vmatprep.subr.mxu0 0.0
        %2648 = vmatpush1.msra.mxu0 0.0
        %2649 = vmatprep.subr.mxu0 0.0
        %2650 = vmatpush1.msra.mxu0 0.0
        %2651 = vmatprep.subr.mxu0 0.0
        %2652 = vmatpush1.msra.mxu0 0.0
        %2653 = vmatprep.subr.mxu0 0.0
        %2654 = vmatpush1.msra.mxu0 0.0
        %2655 = vmatprep.subr.mxu0 0.0
        %2656 = vmatpush1.msra.mxu0 0.0
        %2657 = vmatprep.subr.mxu0 0.0
        %2658 = vmatpush1.msra.mxu0 0.0
        %2659 = vmatprep.subr.mxu0 0.0
        %2660 = vmatpush1.msra.mxu0 0.0
        %2661 = vmatprep.subr.mxu0 0.0
        %2662 = vmatpush1.msra.mxu0 0.0
        %2663 = vmatprep.subr.mxu0 0.0
        %2664 = vmatpush1.msra.mxu0 0.0
        %2665 = vmatprep.subr.mxu0 0.0
        %2666 = vmatpush1.msra.mxu0 0.0
        %2667 = vmatprep.subr.mxu0 0.0
        %2668 = vmatpush1.msra.mxu0 0.0
        %2669 = vmatprep.subr.mxu0 0.0
        %2670 = vmatpush1.msra.mxu0 0.0
        %2671 = vmatprep.subr.mxu0 0.0
        %2672 = vmatpush1.msra.mxu0 0.0
        %2673 = vmatprep.subr.mxu0 0.0
        %2674 = vmatpush1.msra.mxu0 0.0
        %2675 = vmatprep.subr.mxu0 0.0
        %2676 = vmatpush1.msra.mxu0 0.0
        %2677 = vmatprep.subr.mxu0 0.0
        %2678 = vmatpush1.msra.mxu0 0.0
        %2679 = vmatprep.subr.mxu0 0.0
        %2680 = vmatpush1.msra.mxu0 0.0
        %2681 = vmatprep.subr.mxu0 0.0
        %2682 = vmatpush1.msra.mxu0 0.0
        %2683 = vmatprep.subr.mxu0 0.0
        %2684 = vmatpush1.msra.mxu0 0.0
        %2685 = vmatprep.subr.mxu0 0.0
        %2686 = vmatpush1.msra.mxu0 0.0
        %2687 = vmatprep.subr.mxu0 0.0
        %2688 = vmatpush1.msra.mxu0 0.0
        %2689 = vmatprep.mubr.f32.mxu0 0.0
        %v2690 = vand.u32 %v242, 4294901760
        %2691 = vmatmul.mubr.f32.gmra.mrb[0].mxu0 %v2690
        %v2692 = vpop.f32.mrb[0].mxu0
        %v2693 = vadd.f32 %v2598, %v2692
        %v2694 = vpop.f32.mrb[0].mxu0
        %v2695 = vadd.f32 %v2600, %v2694
        %2696 = vmatprep.mubr.f32.mxu0 0.0
        %v2697 = vand.u32 %v245, 4294901760
        %2698 = vmatmul.mubr.f32.gmra.mrb[0].mxu0 %v2697
        %v2699 = vpop.f32.mrb[0].mxu0
        %v2700 = vadd.f32 %v2605, %v2699
        %v2701 = vpop.f32.mrb[0].mxu0
        %v2702 = vadd.f32 %v2607, %v2701
        %2703 = vmatprep.mubr.f32.mxu0 0.0
        %v2704 = vand.u32 %v248, 4294901760
        %2705 = vmatmul.mubr.f32.gmra.mrb[0].mxu0 %v2704
        %v2706 = vpop.f32.mrb[0].mxu0
        %v2707 = vadd.f32 %v2612, %v2706
        %v2708 = vpop.f32.mrb[0].mxu0
        %v2709 = vadd.f32 %v2614, %v2708
        %2710 = vmatprep.mubr.f32.mxu0 0.0
        %v2711 = vand.u32 %v251, 4294901760
        %2712 = vmatmul.mubr.f32.gmra.mrb[0].mxu0 %v2711
        %v2713 = vpop.f32.mrb[0].mxu0
        %v2714 = vadd.f32 %v2619, %v2713
        %v2715 = vpop.f32.mrb[0].mxu0
        %v2716 = vadd.f32 %v2621, %v2715
        %2717 = vdwg.mxu0
        %v2718 = vmax.f32 %v857, 0.0
        %v2719 = vmax.f32 %v859, 0.0
        %v2720 = vmax.f32 %v1469, 0.0
        %v2721 = vmax.f32 %v1471, 0.0
        %v2722 = vmax.f32 %v2081, 0.0
        %v2723 = vmax.f32 %v2083, 0.0
        %v2724 = vmax.f32 %v2693, 0.0
        %v2725 = vmax.f32 %v2695, 0.0
        %v2726 = vmax.f32 %v864, 0.0
        %v2727 = vmax.f32 %v866, 0.0
        %v2728 = vmax.f32 %v1476, 0.0
        %v2729 = vmax.f32 %v1478, 0.0
        %v2730 = vmax.f32 %v2088, 0.0
        %v2731 = vmax.f32 %v2090, 0.0
        %v2732 = vmax.f32 %v2700, 0.0
        %v2733 = vmax.f32 %v2702, 0.0
        %v2734 = vmax.f32 %v871, 0.0
        %v2735 = vmax.f32 %v873, 0.0
        %v2736 = vmax.f32 %v1483, 0.0
        %v2737 = vmax.f32 %v1485, 0.0
        %v2738 = vmax.f32 %v2095, 0.0
        %v2739 = vmax.f32 %v2097, 0.0
        %v2740 = vmax.f32 %v2707, 0.0
        %v2741 = vmax.f32 %v2709, 0.0
        %v2742 = vmax.f32 %v878, 0.0
        %v2743 = vmax.f32 %v880, 0.0
        %v2744 = vmax.f32 %v1490, 0.0
        %v2745 = vmax.f32 %v1492, 0.0
        %v2746 = vmax.f32 %v2102, 0.0
        %v2747 = vmax.f32 %v2104, 0.0
        %v2748 = vmax.f32 %v2714, 0.0
        %v2749 = vmax.f32 %v2716, 0.0
        %2750 = vst [vmem:[%s188] sm:$0xff] %v2718
        %2751 = vst [vmem:[%s188 + $0x8] sm:$0xff] %v2719
        %2752 = vst [vmem:[%s188 + $0x10] sm:$0xff] %v2720
        %2753 = vst [vmem:[%s188 + $0x18] sm:$0xff] %v2721
        %2754 = vst [vmem:[%s188 + $0x20] sm:$0xff] %v2722
        %2755 = vst [vmem:[%s188 + $0x28] sm:$0xff] %v2723
        %2756 = vst [vmem:[%s188 + $0x30] sm:$0xff] %v2724
        %2757 = vst [vmem:[%s188 + $0x38] sm:$0xff] %v2725
        %2758 = vst [vmem:[%s188 + $0x40] sm:$0xff] %v2726
        %2759 = vst [vmem:[%s188 + $0x48] sm:$0xff] %v2727
        %2760 = vst [vmem:[%s188 + $0x50] sm:$0xff] %v2728
        %2761 = vst [vmem:[%s188 + $0x58] sm:$0xff] %v2729
        %2762 = vst [vmem:[%s188 + $0x60] sm:$0xff] %v2730
        %2763 = vst [vmem:[%s188 + $0x68] sm:$0xff] %v2731
        %2764 = vst [vmem:[%s188 + $0x70] sm:$0xff] %v2732
        %2765 = vst [vmem:[%s188 + $0x78] sm:$0xff] %v2733
        %2766 = vst [vmem:[%s188 + $0x80] sm:$0xff] %v2734
        %2767 = vst [vmem:[%s188 + $0x88] sm:$0xff] %v2735
        %2768 = vst [vmem:[%s188 + $0x90] sm:$0xff] %v2736
        %2769 = vst [vmem:[%s188 + $0x98] sm:$0xff] %v2737
        %2770 = vst [vmem:[%s188 + $0xa0] sm:$0xff] %v2738
        %2771 = vst [vmem:[%s188 + $0xa8] sm:$0xff] %v2739
        %2772 = vst [vmem:[%s188 + $0xb0] sm:$0xff] %v2740
        %2773 = vst [vmem:[%s188 + $0xb8] sm:$0xff] %v2741
        %2774 = vst [vmem:[%s188 + $0xc0] sm:$0xff] %v2742
        %2775 = vst [vmem:[%s188 + $0xc8] sm:$0xff] %v2743
        %2776 = vst [vmem:[%s188 + $0xd0] sm:$0xff] %v2744
        %2777 = vst [vmem:[%s188 + $0xd8] sm:$0xff] %v2745
        %2778 = vst [vmem:[%s188 + $0xe0] sm:$0xff] %v2746
        %2779 = vst [vmem:[%s188 + $0xe8] sm:$0xff] %v2747
        %2780 = vst [vmem:[%s188 + $0xf0] sm:$0xff] %v2748
        %2781 = vst [vmem:[%s188 + $0xf8] sm:$0xff] %v2749
        %s2782 = sand.u32 %s109, 1
        %s2783 = scalar_lea.sflag [#allocation3], %s2782
        %s2784 = sand.u32 %s109, 1
        %s2785 = smul.addr %s2784, 256
        %s2786 = scalar_lea.vmem [#allocation2], %s2785
        // Predicated region
        $region33: #{tpu_custom_call.1} parent=31 // pred_check
          %p2787 = pneg %p119
        $region34: #{tpu_custom_call.1} parent=31 // pred_check_branch
          %2789 = sbr.rel (%p2787) target = $region36
        $region35: #{tpu_custom_call.1} parent=31 // pred_region
          %s2790 = smul.u32 8, %s22
          %s2792 = ssub.s32 4096, 4096
          %2793 = vsyncadd %s2783, %s2792
          %s2794 = smul.addr %s21, 32
          %s2795 = sadd.s32 %s2790, %s2794
          %s2796 = smul.addr %s2795, 128
          %s2797 = scalar_lea.hbm %s3, %s2796
          %s2798 = sshll.u32 %s2786, 4
          %s2799 = int_to_ptr.vmem [resolvable:$true] %s2798
          %2804 = dma.vmem_to_hbm [thread:$0]  %s2799, 4096, %s2797, %s2783, 1024, 1024, 64
        $region36: #{tpu_custom_call.1} parent=31 // pred_fallthru
          _
      $region32: #{tpu_custom_call.1} parent=5 // pred_fallthru
        _
      %p2805 = scmp.le.s32.totalorder 2, %s12
      // Predicated region
      $region37: #{tpu_custom_call.1} parent=5 // pred_check
        %p2806 = pneg %p2805
      $region38: #{tpu_custom_call.1} parent=5 // pred_check_branch
        %2808 = sbr.rel (%p2806) target = $region40
      $region39: #{tpu_custom_call.1} parent=5 // pred_region
        %s2809 = ssub.s32 %s12, 2
        // Predicated region
        $region41: #{tpu_custom_call.1} parent=39 // pred_check
          %p2810 = pneg %p125
        $region42: #{tpu_custom_call.1} parent=39 // pred_check_branch
          %2812 = sbr.rel (%p2810) target = $region44
        $region43: #{tpu_custom_call.1} parent=39 // pred_region
          %s2813 = sand.u32 %s110, 1
          %s2814 = scalar_lea.sflag [#allocation3], %s2813
          %s2815 = sand.u32 %s110, 1
          %s2816 = smul.addr %s2815, 256
          %s2817 = scalar_lea.vmem [#allocation2], %s2816
          %2818 = dma.done %s2814, 4096
        $region44: #{tpu_custom_call.1} parent=39 // pred_fallthru
          _
      $region40: #{tpu_custom_call.1} parent=5 // pred_fallthru
        _
    $region6: #{tpu_custom_call.1} parent=1 // loop_footer
      %s16 = sadd.s32 1, %s12
    $region7: #{tpu_custom_call.1} parent=1 // loop_footer_branch
      %11 = sbr.rel target = $region3
    $region8: #{tpu_custom_call.1} parent=1 // loop_exit
      _
    %2819 = vsyncpa [#allocation3], 1
    %s2820 = scalar_lea.sflag [#allocation3], 1
    %2821 = vsyncpa %s2820, 1

</llo_original>
